<compile_context>
chip_gen: v7x
topology: tpu7x:2x2x1
jax: 0.10.0
libtpu: 0.0.40
codegen_flags: <defaults>
</compile_context>

<pallas_src>
import functools

import jax
import jax.numpy as jnp
from jax import lax
from jax.experimental import pallas as pl
from jax.experimental.pallas import tpu as pltpu


LN_EPS = 1e-6  # SigLIP/DINO ViTs use 1e-6 (torch.nn.LayerNorm default is 1e-5).


def _layernorm(x, g, b):
    mu = jnp.mean(x, axis=-1, keepdims=True)
    var = jnp.mean((x - mu) * (x - mu), axis=-1, keepdims=True)
    return (x - mu) * lax.rsqrt(var + LN_EPS) * g + b


def _quantize(x):
    # TODO(synk): torchvision ToPILImage -> PIL -> backbone-internal
    # preprocessing is a host round-trip; only its uint8 quantization is
    # emulated here (fused into kernel prologue/epilogue, never a separate pass).
    return jnp.floor(jnp.clip(x, 0.0, 1.0) * 255.0) * (1.0 / 255.0)


# ----------------------------------------------------------------------------
# Kernel 1: bilinear resize (align_corners=True) + fused uint8 quantization
#           single grid step; width pass as one fat matmul over all planes
# ----------------------------------------------------------------------------

def _resize_quantize_kernel(x_ref, wwt_ref, wh_ref, o_ref):
    bc, h, w = x_ref.shape
    out_w = o_ref.shape[2]
    # width pass: one (bc*h, w) @ (w, out_w) matmul for all image planes
    t = jnp.dot(x_ref[...].reshape(bc * h, w), wwt_ref[...],
                preferred_element_type=jnp.float32)
    t = t.reshape(bc, h, out_w)
    wh = wh_ref[...]
    for b in range(bc):                       # static unroll, bc = B*C is small
        z = jnp.dot(wh, t[b], preferred_element_type=jnp.float32)
        o_ref[b] = _quantize(z).astype(o_ref.dtype)


def _bilinear_matrix(out_size, in_size):
    # align_corners=True bilinear interpolation matrix (out_size, in_size)
    if out_size == 1:
        return jnp.zeros((1, in_size), jnp.float32).at[0, 0].set(1.0)
    scale = (in_size - 1) / (out_size - 1)
    pos = jnp.arange(out_size, dtype=jnp.float32) * scale
    lo = jnp.clip(jnp.floor(pos).astype(jnp.int32), 0, in_size - 2)
    frac = pos - lo.astype(jnp.float32)
    rows = jnp.arange(out_size)
    m = jnp.zeros((out_size, in_size), jnp.float32)
    m = m.at[rows, lo].add(1.0 - frac)
    m = m.at[rows, lo + 1].add(frac)
    return m


def pallas_bilinear_resize_quantize(x, out_h, out_w):
    """interpolate(mode='bilinear', align_corners=True) + uint8 quantization."""
    B, C, H, W = x.shape
    BC = B * C
    wh = _bilinear_matrix(out_h, H)            # (out_h, H)
    wwt = _bilinear_matrix(out_w, W).T         # (W, out_w)
    xf = x.reshape(BC, H, W).astype(jnp.float32)
    # single invocation, whole arrays in VMEM (tiny); output streamed as bf16
    out = pl.pallas_call(
        _resize_quantize_kernel,
        out_shape=jax.ShapeDtypeStruct((BC, out_h, out_w), jnp.bfloat16),
    )(xf, wwt, wh)
    return out.reshape(B, C, out_h, out_w)


# ----------------------------------------------------------------------------
# Kernel 2: fully-fused ViT backbone
#   grid = (batch_blocks, depth), activation resident in VMEM scratch,
#   patch-embed fused at layer 0, final LN fused at the last layer,
#   shallow (post-layer-0) and deep (post-final-LN) features as two outputs.
# ----------------------------------------------------------------------------

def _vit_backbone_kernel(patches_ref, pw_ref, posb_ref, vec_ref,
                         qkvw_ref, projw_ref, fc1w_ref, fc2w_ref,
                         shallow_ref, deep_ref, act_ref,
                         *, heads, depth, quantize, gelu_tanh, nb, L, D, M):
    l = pl.program_id(1)
    R = nb * L
    Dh = D // heads
    scale = 1.0 / float(Dh) ** 0.5

    # packed per-layer bias/gain vectors; every offset is a multiple of 128
    def seg(off, n):
        return vec_ref[0, :, off:off + n]            # (1, n) f32

    ln1_g = seg(0, D)
    ln1_b = seg(D, D)
    qkv_b = seg(2 * D, 3 * D)
    proj_b = seg(5 * D, D)
    ln2_g = seg(6 * D, D)
    ln2_b = seg(7 * D, D)
    fc2_b = seg(8 * D, D)
    fn_g = seg(9 * D, D)
    fn_b = seg(10 * D, D)
    fc1_b = seg(11 * D, M)

    # --- layer-0 prologue: patch embed (+ optional quantize) + pos-emb ------
    @pl.when(l == 0)
    def _():
        p = patches_ref[...].reshape(R, -1)
        if quantize:
            p = _quantize(p.astype(jnp.float32))
        emb = jnp.dot(p.astype(jnp.bfloat16), pw_ref[...],
                      preferred_element_type=jnp.float32)       # (R, D)
        emb = emb.reshape(nb, L, D) + posb_ref[...]             # bias folded in
        act_ref[...] = emb.reshape(R, D)

    # --- encoder layer l (LN1 -> QKV -> MHA -> proj -> res -> LN2 -> MLP) ---
    x = act_ref[...]                                            # (R, D) f32

    h = _layernorm(x, ln1_g, ln1_b).astype(jnp.bfloat16)
    qkv = jnp.dot(h, qkvw_ref[0],
                  preferred_element_type=jnp.float32) + qkv_b   # (R, 3D) f32
    qkv_bf = qkv.astype(jnp.bfloat16)
    q = qkv_bf[:, 0:D].reshape(nb, L, D)                        # 128-aligned slices
    k = qkv_bf[:, D:2 * D].reshape(nb, L, D)
    v = qkv_bf[:, 2 * D:3 * D].reshape(nb, L, D)

    projw = projw_ref[0]
    attn = jnp.zeros((R, D), jnp.float32)
    # proj(concat_h(o_h)) computed as sum_h o_h @ proj_w[h*Dh:(h+1)*Dh, :]
    for hd in range(heads):                   # static unroll, heads is small
        lo = hd * Dh
        qh = q[:, :, lo:lo + Dh]
        kh = k[:, :, lo:lo + Dh]
        vh = v[:, :, lo:lo + Dh]
        s = jnp.einsum('bqd,bkd->bqk', qh, kh,
                       preferred_element_type=jnp.float32) * scale
        s = s - jnp.max(s, axis=-1, keepdims=True)
        p = jnp.exp(s)
        p = p / jnp.sum(p, axis=-1, keepdims=True)              # exact softmax
        oh = jnp.einsum('bqk,bkd->bqd', p.astype(jnp.bfloat16), vh,
                        preferred_element_type=jnp.float32)     # (nb, L, Dh)
        attn = attn + jnp.dot(oh.reshape(R, Dh).astype(jnp.bfloat16),
                              projw[lo:lo + Dh, :],
                              preferred_element_type=jnp.float32)
    x = x + attn + proj_b

    h2 = _layernorm(x, ln2_g, ln2_b).astype(jnp.bfloat16)
    m = jnp.dot(h2, fc1w_ref[0],
                preferred_element_type=jnp.float32) + fc1_b
    # TODO(synk): DINOv2 uses exact erf-GELU; tanh approximation is used for
    # both synthetic backbones here (flip gelu_tanh=False when parity needed).
    m = jax.nn.gelu(m, approximate=gelu_tanh).astype(jnp.bfloat16)
    x = x + jnp.dot(m, fc2w_ref[0],
                    preferred_element_type=jnp.float32) + fc2_b

    act_ref[...] = x                                            # carry to next layer

    @pl.when(l == 0)
    def _():
        shallow_ref[...] = x.reshape(nb, L, D).astype(shallow_ref.dtype)

    @pl.when(l == depth - 1)
    def _():
        y = _layernorm(x, fn_g, fn_b)                           # final backbone LN
        deep_ref[...] = y.reshape(nb, L, D).astype(deep_ref.dtype)


def vit_backbone(params, patches, *, quantize_input):
    """Returns [shallow, deep]; each feature is (N, L, D) bf16."""
    cfg = params["cfg"]
    heads, depth, D, M = cfg["heads"], cfg["depth"], cfg["dim"], cfg["mlp"]
    N, L, K = patches.shape
    VTOT = 11 * D + M

    # batch samples into MXU rows: aim for >=128 rows per grid step
    # (keep N // nb >= 2 when targeting v7x's two TensorCores at larger N)
    max_nb = max(1, 128 // L)
    nb = 1
    for d in range(1, N + 1):
        if N % d == 0 and d <= max_nb:
            nb = d
    grid = (N // nb, depth)

    kern = functools.partial(
        _vit_backbone_kernel, heads=heads, depth=depth, quantize=quantize_input,
        gelu_tanh=cfg["gelu_tanh"], nb=nb, L=L, D=D, M=M)

    shallow, deep = pl.pallas_call(
        kern,
        out_shape=(jax.ShapeDtypeStruct((N, L, D), jnp.bfloat16),
                   jax.ShapeDtypeStruct((N, L, D), jnp.bfloat16)),
        grid=grid,
        in_specs=[
            pl.BlockSpec((nb, L, K), lambda b, l: (b, 0, 0)),        # patches
            pl.BlockSpec((K, D), lambda b, l: (0, 0)),               # patch embed W
            pl.BlockSpec((L, D), lambda b, l: (0, 0)),               # pos-emb (+bias)
            pl.BlockSpec((1, 1, VTOT), lambda b, l: (l, 0, 0)),      # packed vectors
            pl.BlockSpec((1, D, 3 * D), lambda b, l: (l, 0, 0)),     # qkv W
            pl.BlockSpec((1, D, D), lambda b, l: (l, 0, 0)),         # proj W
            pl.BlockSpec((1, D, M), lambda b, l: (l, 0, 0)),         # fc1 W
            pl.BlockSpec((1, M, D), lambda b, l: (l, 0, 0)),         # fc2 W
        ],
        out_specs=[
            pl.BlockSpec((nb, L, D), lambda b, l: (b, 0, 0)),        # shallow
            pl.BlockSpec((nb, L, D), lambda b, l: (b, 0, 0)),        # deep
        ],
        scratch_shapes=[pltpu.VMEM((nb * L, D), jnp.float32)],       # resident act
        compiler_params=pltpu.CompilerParams(
            dimension_semantics=("parallel", "arbitrary")),
    )(patches, params["patch_w"], params["posb"], params["vec"],
      params["qkv_w"], params["proj_w"], params["fc1_w"], params["fc2_w"])
    return [shallow, deep]


# ----------------------------------------------------------------------------
# Synthetic ViT backbones (SigLIP / DINO stand-ins), depth-stacked weights
# ----------------------------------------------------------------------------

def init_vit_params(key, *, in_ch, patch, image_size, depth, dim, heads,
                    mlp_dim, gelu_tanh=True):
    grid = image_size // patch
    L = grid * grid
    K = in_ch * patch * patch
    scale = 0.02
    keys = jax.random.split(key, 2 + depth)

    def wn(k, shape):
        return jax.random.normal(k, shape, jnp.float32) * scale

    patch_b = jnp.zeros((dim,), jnp.float32)
    pos_emb = wn(keys[1], (L, dim))
    fn_g = jnp.ones((dim,), jnp.float32)
    fn_b = jnp.zeros((dim,), jnp.float32)

    qkv_w, proj_w, fc1_w, fc2_w, vec_rows = [], [], [], [], []
    for d in range(depth):
        k = jax.random.split(keys[2 + d], 4)
        ln1_g = jnp.ones((dim,), jnp.float32)
        ln1_b = jnp.zeros((dim,), jnp.float32)
        qkv_b = jnp.zeros((3 * dim,), jnp.float32)
        proj_b = jnp.zeros((dim,), jnp.float32)
        ln2_g = jnp.ones((dim,), jnp.float32)
        ln2_b = jnp.zeros((dim,), jnp.float32)
        fc1_b = jnp.zeros((mlp_dim,), jnp.float32)
        fc2_b = jnp.zeros((dim,), jnp.float32)
        qkv_w.append(wn(k[0], (dim, 3 * dim)).astype(jnp.bfloat16))
        proj_w.append(wn(k[1], (dim, dim)).astype(jnp.bfloat16))
        fc1_w.append(wn(k[2], (dim, mlp_dim)).astype(jnp.bfloat16))
        fc2_w.append(wn(k[3], (mlp_dim, dim)).astype(jnp.bfloat16))
        vec_rows.append(jnp.concatenate(
            [ln1_g, ln1_b, qkv_b, proj_b, ln2_g, ln2_b, fc2_b, fn_g, fn_b,
             fc1_b]).astype(jnp.float32))

    return {
        "cfg": {"patch": patch, "dim": dim, "heads": heads, "depth": depth,
                "mlp": mlp_dim, "gelu_tanh": gelu_tanh},
        "patch_w": wn(keys[0], (K, dim)).astype(jnp.bfloat16),
        "posb": (pos_emb + patch_b[None, :]).astype(jnp.float32),   # bias folded
        "qkv_w": jnp.stack(qkv_w),          # (depth, D, 3D)  bf16
        "proj_w": jnp.stack(proj_w),        # (depth, D, D)   bf16
        "fc1_w": jnp.stack(fc1_w),          # (depth, D, M)   bf16
        "fc2_w": jnp.stack(fc2_w),          # (depth, M, D)   bf16
        "vec": jnp.stack(vec_rows)[:, None, :],   # (depth, 1, 11D+M) f32
    }


def _im2col(images_nchw, patch):
    """Non-overlapping patch extraction (stride=patch conv as matmul): (N, L, C*P*P)."""
    N, C, H, W = images_nchw.shape
    gh, gw = H // patch, W // patch
    p = images_nchw.reshape(N, C, gh, patch, gw, patch)
    p = p.transpose(0, 2, 4, 1, 3, 5).reshape(N, gh * gw, C * patch * patch)
    return p


# ----------------------------------------------------------------------------
# ShallowDeepPatchfySiglipDinoEncoder_v2.forward (patchfy branch)
# ----------------------------------------------------------------------------

def shallowdeep_forward(params, image_tensor, *, patchfy_scale=2,
                        default_image_size=32):
    B, C, H, W = image_tensor.shape
    hp = wp = patchfy_scale
    h, w = H // hp, W // wp
    patch = params["siglip"]["cfg"]["patch"]
    assert params["dino"]["cfg"]["patch"] == patch      # allows shared im2col

    # rearrange 'b c (h hp) (w wp) -> (b hp wp) c h w'
    image_local = image_tensor.reshape(B, C, h, hp, w, wp)
    image_local = image_local.transpose(0, 3, 5, 1, 2, 4).reshape(
        B * hp * wp, C, h, w)

    # bilinear resize (align_corners=True) with quantization fused in-kernel
    image_global = pallas_bilinear_resize_quantize(
        image_tensor, default_image_size, default_image_size)

    # im2col computed once per image set and shared by the two backbones;
    # the global patches stream as bf16 (already quantized), the local ones
    # stay f32 (quantization is fused into the patch-embed prologue).
    patches_global = _im2col(image_global, patch)                # bf16
    patches_local = _im2col(image_local.astype(jnp.float32), patch)

    sig_g = vit_backbone(params["siglip"], patches_global, quantize_input=False)
    dino_g = vit_backbone(params["dino"], patches_global, quantize_input=False)
    embeddings = [jnp.concatenate([s, d], axis=-1) for s, d in zip(sig_g, dino_g)]

    # local branch: only the deep features are used downstream
    sig_l_deep = vit_backbone(params["siglip"], patches_local,
                              quantize_input=True)[-1]
    dino_l_deep = vit_backbone(params["dino"], patches_local,
                               quantize_input=True)[-1]
    local_deep = jnp.concatenate([sig_l_deep, dino_l_deep], axis=-1)

    # rearrange '(b hp wp) l c -> b (l hp wp) c'
    _, L, Ct = local_deep.shape
    local_deep = local_deep.reshape(B, hp, wp, L, Ct).transpose(0, 3, 1, 2, 4)
    local_deep = local_deep.reshape(B, L * hp * wp, Ct)
    embeddings.append(local_deep)

    if len(embeddings) == 1:
        embeddings = embeddings[0]
    return embeddings


# ----------------------------------------------------------------------------
# main
# ----------------------------------------------------------------------------

if __name__ == "__main__":
    key = jax.random.PRNGKey(0)
    k_img, k_sig, k_dino = jax.random.split(key, 3)

    # small, shape-consistent, lane-dense configuration
    B, C, H, W = 2, 3, 64, 64
    patchfy_scale = 2
    default_image_size = 32        # stands in for 384
    patch = 8                      # 32x32 images -> 4x4 grid -> L = 16 tokens

    image_ref = jax.random.uniform(k_img, (B, C, H, W), jnp.float32)

    params = {
        "siglip": init_vit_params(k_sig, in_ch=C, patch=patch,
                                  image_size=default_image_size,
                                  depth=2, dim=128, heads=2, mlp_dim=256,
                                  gelu_tanh=True),
        "dino": init_vit_params(k_dino, in_ch=C, patch=patch,
                                image_size=default_image_size,
                                depth=2, dim=128, heads=4, mlp_dim=256,
                                gelu_tanh=True),
    }

    embeddings = shallowdeep_forward(
        params, image_ref,
        patchfy_scale=patchfy_scale, default_image_size=default_image_size)

    for e in embeddings:
        jax.block_until_ready(e)

    # expected shapes: [(2, 16, 256), (2, 16, 256), (2, 64, 256)]
    assert embeddings[0].shape == (B, 16, 256)
    assert embeddings[1].shape == (B, 16, 256)
    assert embeddings[2].shape == (B, 64, 256)
    assert all(bool(jnp.all(jnp.isfinite(e.astype(jnp.float32)))) for e in embeddings)

    print("KERNEL_OK")
</pallas_src>

<mosaic_0001>
module attributes {stable_mosaic.version = 11 : i64} {
  func.func @_resize_quantize_kernel(%arg0: memref<6x64x64xf32, #tpu.memory_space<vmem>>, %arg1: memref<64x32xf32, #tpu.memory_space<vmem>>, %arg2: memref<32x64xf32, #tpu.memory_space<vmem>>, %arg3: memref<6x32x32xbf16, #tpu.memory_space<vmem>>) attributes {dimension_semantics = [], scalar_prefetch = 0 : i64, scratch_operands = 0 : i64, tpu.core_type = #tpu.core_type<tc>} {
    %c0 = arith.constant 0 : index
    %c0_0 = arith.constant 0 : index
    %c0_1 = arith.constant 0 : index
    %0 = vector.load %arg0[%c0, %c0_0, %c0_1] : memref<6x64x64xf32, #tpu.memory_space<vmem>>, vector<6x64x64xf32>
    %1 = vector.shape_cast %0 : vector<6x64x64xf32> to vector<384x64xf32>
    %c0_2 = arith.constant 0 : index
    %c0_3 = arith.constant 0 : index
    %2 = vector.load %arg1[%c0_2, %c0_3] : memref<64x32xf32, #tpu.memory_space<vmem>>, vector<64x32xf32>
    %cst = arith.constant dense<0.000000e+00> : vector<384x32xf32>
    %3 = tpu.matmul %1, %2, %cst {dimension_numbers = #tpu.dot_dimension_numbers<[1], [0], [0], [1], [0, 0, 1, 1], [], []>} : vector<384x64xf32>, vector<64x32xf32>, vector<384x32xf32> -> vector<384x32xf32>
    %4 = vector.shape_cast %3 : vector<384x32xf32> to vector<6x64x32xf32>
    %c0_4 = arith.constant 0 : index
    %c0_5 = arith.constant 0 : index
    %5 = vector.load %arg2[%c0_4, %c0_5] : memref<32x64xf32, #tpu.memory_space<vmem>>, vector<32x64xf32>
    %6 = vector.extract_strided_slice %4 {offsets = [0, 0, 0], sizes = [1, 64, 32], strides = [1, 1, 1]} : vector<6x64x32xf32> to vector<1x64x32xf32>
    %7 = vector.shape_cast %6 : vector<1x64x32xf32> to vector<64x32xf32>
    %cst_6 = arith.constant dense<0.000000e+00> : vector<32x32xf32>
    %8 = tpu.matmul %5, %7, %cst_6 {dimension_numbers = #tpu.dot_dimension_numbers<[1], [0], [0], [1], [0, 0, 1, 1], [], []>} : vector<32x64xf32>, vector<64x32xf32>, vector<32x32xf32> -> vector<32x32xf32>
    %cst_7 = arith.constant 0.000000e+00 : f32
    %cst_8 = arith.constant 1.000000e+00 : f32
    %9 = vector.broadcast %cst_7 : f32 to vector<32x32xf32>
    %10 = arith.maximumf %9, %8 : vector<32x32xf32>
    %11 = vector.broadcast %cst_8 : f32 to vector<32x32xf32>
    %12 = arith.minimumf %11, %10 : vector<32x32xf32>
    %cst_9 = arith.constant 2.550000e+02 : f32
    %13 = vector.broadcast %cst_9 : f32 to vector<32x32xf32>
    %14 = arith.mulf %12, %13 : vector<32x32xf32>
    %15 = math.floor %14 : vector<32x32xf32>
    %cst_10 = arith.constant 0.00392156886 : f32
    %16 = vector.broadcast %cst_10 : f32 to vector<32x32xf32>
    %17 = arith.mulf %15, %16 : vector<32x32xf32>
    %18 = arith.truncf %17 : vector<32x32xf32> to vector<32x32xbf16>
    %c0_11 = arith.constant 0 : index
    %c0_12 = arith.constant 0 : index
    %c0_13 = arith.constant 0 : index
    %19 = vector.load %arg3[%c0_11, %c0_12, %c0_13] : memref<6x32x32xbf16, #tpu.memory_space<vmem>>, vector<1x32x32xbf16>
    %20 = vector.shape_cast %19 : vector<1x32x32xbf16> to vector<32x32xbf16>
    %21 = vector.shape_cast %18 : vector<32x32xbf16> to vector<1x32x32xbf16>
    tpu.vector_store %arg3[%c0_11, %c0_12, %c0_13], %21 {strides = array<i32>} : memref<6x32x32xbf16, #tpu.memory_space<vmem>>, vector<1x32x32xbf16>,
    %22 = vector.extract_strided_slice %4 {offsets = [1, 0, 0], sizes = [1, 64, 32], strides = [1, 1, 1]} : vector<6x64x32xf32> to vector<1x64x32xf32>
    %23 = vector.shape_cast %22 : vector<1x64x32xf32> to vector<64x32xf32>
    %cst_14 = arith.constant dense<0.000000e+00> : vector<32x32xf32>
    %24 = tpu.matmul %5, %23, %cst_14 {dimension_numbers = #tpu.dot_dimension_numbers<[1], [0], [0], [1], [0, 0, 1, 1], [], []>} : vector<32x64xf32>, vector<64x32xf32>, vector<32x32xf32> -> vector<32x32xf32>
    %cst_15 = arith.constant 0.000000e+00 : f32
    %cst_16 = arith.constant 1.000000e+00 : f32
    %25 = vector.broadcast %cst_15 : f32 to vector<32x32xf32>
    %26 = arith.maximumf %25, %24 : vector<32x32xf32>
    %27 = vector.broadcast %cst_16 : f32 to vector<32x32xf32>
    %28 = arith.minimumf %27, %26 : vector<32x32xf32>
    %cst_17 = arith.constant 2.550000e+02 : f32
    %29 = vector.broadcast %cst_17 : f32 to vector<32x32xf32>
    %30 = arith.mulf %28, %29 : vector<32x32xf32>
    %31 = math.floor %30 : vector<32x32xf32>
    %cst_18 = arith.constant 0.00392156886 : f32
    %32 = vector.broadcast %cst_18 : f32 to vector<32x32xf32>
    %33 = arith.mulf %31, %32 : vector<32x32xf32>
    %34 = arith.truncf %33 : vector<32x32xf32> to vector<32x32xbf16>
    %c1 = arith.constant 1 : index
    %c0_19 = arith.constant 0 : index
    %c0_20 = arith.constant 0 : index
    %35 = vector.load %arg3[%c1, %c0_19, %c0_20] : memref<6x32x32xbf16, #tpu.memory_space<vmem>>, vector<1x32x32xbf16>
    %36 = vector.shape_cast %35 : vector<1x32x32xbf16> to vector<32x32xbf16>
    %37 = vector.shape_cast %34 : vector<32x32xbf16> to vector<1x32x32xbf16>
    tpu.vector_store %arg3[%c1, %c0_19, %c0_20], %37 {strides = array<i32>} : memref<6x32x32xbf16, #tpu.memory_space<vmem>>, vector<1x32x32xbf16>,
    %38 = vector.extract_strided_slice %4 {offsets = [2, 0, 0], sizes = [1, 64, 32], strides = [1, 1, 1]} : vector<6x64x32xf32> to vector<1x64x32xf32>
    %39 = vector.shape_cast %38 : vector<1x64x32xf32> to vector<64x32xf32>
    %cst_21 = arith.constant dense<0.000000e+00> : vector<32x32xf32>
    %40 = tpu.matmul %5, %39, %cst_21 {dimension_numbers = #tpu.dot_dimension_numbers<[1], [0], [0], [1], [0, 0, 1, 1], [], []>} : vector<32x64xf32>, vector<64x32xf32>, vector<32x32xf32> -> vector<32x32xf32>
    %cst_22 = arith.constant 0.000000e+00 : f32
    %cst_23 = arith.constant 1.000000e+00 : f32
    %41 = vector.broadcast %cst_22 : f32 to vector<32x32xf32>
    %42 = arith.maximumf %41, %40 : vector<32x32xf32>
    %43 = vector.broadcast %cst_23 : f32 to vector<32x32xf32>
    %44 = arith.minimumf %43, %42 : vector<32x32xf32>
    %cst_24 = arith.constant 2.550000e+02 : f32
    %45 = vector.broadcast %cst_24 : f32 to vector<32x32xf32>
    %46 = arith.mulf %44, %45 : vector<32x32xf32>
    %47 = math.floor %46 : vector<32x32xf32>
    %cst_25 = arith.constant 0.00392156886 : f32
    %48 = vector.broadcast %cst_25 : f32 to vector<32x32xf32>
    %49 = arith.mulf %47, %48 : vector<32x32xf32>
    %50 = arith.truncf %49 : vector<32x32xf32> to vector<32x32xbf16>
    %c2 = arith.constant 2 : index
    %c0_26 = arith.constant 0 : index
    %c0_27 = arith.constant 0 : index
    %51 = vector.load %arg3[%c2, %c0_26, %c0_27] : memref<6x32x32xbf16, #tpu.memory_space<vmem>>, vector<1x32x32xbf16>
    %52 = vector.shape_cast %51 : vector<1x32x32xbf16> to vector<32x32xbf16>
    %53 = vector.shape_cast %50 : vector<32x32xbf16> to vector<1x32x32xbf16>
    tpu.vector_store %arg3[%c2, %c0_26, %c0_27], %53 {strides = array<i32>} : memref<6x32x32xbf16, #tpu.memory_space<vmem>>, vector<1x32x32xbf16>,
    %54 = vector.extract_strided_slice %4 {offsets = [3, 0, 0], sizes = [1, 64, 32], strides = [1, 1, 1]} : vector<6x64x32xf32> to vector<1x64x32xf32>
    %55 = vector.shape_cast %54 : vector<1x64x32xf32> to vector<64x32xf32>
    %cst_28 = arith.constant dense<0.000000e+00> : vector<32x32xf32>
    %56 = tpu.matmul %5, %55, %cst_28 {dimension_numbers = #tpu.dot_dimension_numbers<[1], [0], [0], [1], [0, 0, 1, 1], [], []>} : vector<32x64xf32>, vector<64x32xf32>, vector<32x32xf32> -> vector<32x32xf32>
    %cst_29 = arith.constant 0.000000e+00 : f32
    %cst_30 = arith.constant 1.000000e+00 : f32
    %57 = vector.broadcast %cst_29 : f32 to vector<32x32xf32>
    %58 = arith.maximumf %57, %56 : vector<32x32xf32>
    %59 = vector.broadcast %cst_30 : f32 to vector<32x32xf32>
    %60 = arith.minimumf %59, %58 : vector<32x32xf32>
    %cst_31 = arith.constant 2.550000e+02 : f32
    %61 = vector.broadcast %cst_31 : f32 to vector<32x32xf32>
    %62 = arith.mulf %60, %61 : vector<32x32xf32>
    %63 = math.floor %62 : vector<32x32xf32>
    %cst_32 = arith.constant 0.00392156886 : f32
    %64 = vector.broadcast %cst_32 : f32 to vector<32x32xf32>
    %65 = arith.mulf %63, %64 : vector<32x32xf32>
    %66 = arith.truncf %65 : vector<32x32xf32> to vector<32x32xbf16>
    %c3 = arith.constant 3 : index
    %c0_33 = arith.constant 0 : index
    %c0_34 = arith.constant 0 : index
    %67 = vector.load %arg3[%c3, %c0_33, %c0_34] : memref<6x32x32xbf16, #tpu.memory_space<vmem>>, vector<1x32x32xbf16>
    %68 = vector.shape_cast %67 : vector<1x32x32xbf16> to vector<32x32xbf16>
    %69 = vector.shape_cast %66 : vector<32x32xbf16> to vector<1x32x32xbf16>
    tpu.vector_store %arg3[%c3, %c0_33, %c0_34], %69 {strides = array<i32>} : memref<6x32x32xbf16, #tpu.memory_space<vmem>>, vector<1x32x32xbf16>,
    %70 = vector.extract_strided_slice %4 {offsets = [4, 0, 0], sizes = [1, 64, 32], strides = [1, 1, 1]} : vector<6x64x32xf32> to vector<1x64x32xf32>
    %71 = vector.shape_cast %70 : vector<1x64x32xf32> to vector<64x32xf32>
    %cst_35 = arith.constant dense<0.000000e+00> : vector<32x32xf32>
    %72 = tpu.matmul %5, %71, %cst_35 {dimension_numbers = #tpu.dot_dimension_numbers<[1], [0], [0], [1], [0, 0, 1, 1], [], []>} : vector<32x64xf32>, vector<64x32xf32>, vector<32x32xf32> -> vector<32x32xf32>
    %cst_36 = arith.constant 0.000000e+00 : f32
    %cst_37 = arith.constant 1.000000e+00 : f32
    %73 = vector.broadcast %cst_36 : f32 to vector<32x32xf32>
    %74 = arith.maximumf %73, %72 : vector<32x32xf32>
    %75 = vector.broadcast %cst_37 : f32 to vector<32x32xf32>
    %76 = arith.minimumf %75, %74 : vector<32x32xf32>
    %cst_38 = arith.constant 2.550000e+02 : f32
    %77 = vector.broadcast %cst_38 : f32 to vector<32x32xf32>
    %78 = arith.mulf %76, %77 : vector<32x32xf32>
    %79 = math.floor %78 : vector<32x32xf32>
    %cst_39 = arith.constant 0.00392156886 : f32
    %80 = vector.broadcast %cst_39 : f32 to vector<32x32xf32>
    %81 = arith.mulf %79, %80 : vector<32x32xf32>
    %82 = arith.truncf %81 : vector<32x32xf32> to vector<32x32xbf16>
    %c4 = arith.constant 4 : index
    %c0_40 = arith.constant 0 : index
    %c0_41 = arith.constant 0 : index
    %83 = vector.load %arg3[%c4, %c0_40, %c0_41] : memref<6x32x32xbf16, #tpu.memory_space<vmem>>, vector<1x32x32xbf16>
    %84 = vector.shape_cast %83 : vector<1x32x32xbf16> to vector<32x32xbf16>
    %85 = vector.shape_cast %82 : vector<32x32xbf16> to vector<1x32x32xbf16>
    tpu.vector_store %arg3[%c4, %c0_40, %c0_41], %85 {strides = array<i32>} : memref<6x32x32xbf16, #tpu.memory_space<vmem>>, vector<1x32x32xbf16>,
    %86 = vector.extract_strided_slice %4 {offsets = [5, 0, 0], sizes = [1, 64, 32], strides = [1, 1, 1]} : vector<6x64x32xf32> to vector<1x64x32xf32>
    %87 = vector.shape_cast %86 : vector<1x64x32xf32> to vector<64x32xf32>
    %cst_42 = arith.constant dense<0.000000e+00> : vector<32x32xf32>
    %88 = tpu.matmul %5, %87, %cst_42 {dimension_numbers = #tpu.dot_dimension_numbers<[1], [0], [0], [1], [0, 0, 1, 1], [], []>} : vector<32x64xf32>, vector<64x32xf32>, vector<32x32xf32> -> vector<32x32xf32>
    %cst_43 = arith.constant 0.000000e+00 : f32
    %cst_44 = arith.constant 1.000000e+00 : f32
    %89 = vector.broadcast %cst_43 : f32 to vector<32x32xf32>
    %90 = arith.maximumf %89, %88 : vector<32x32xf32>
    %91 = vector.broadcast %cst_44 : f32 to vector<32x32xf32>
    %92 = arith.minimumf %91, %90 : vector<32x32xf32>
    %cst_45 = arith.constant 2.550000e+02 : f32
    %93 = vector.broadcast %cst_45 : f32 to vector<32x32xf32>
    %94 = arith.mulf %92, %93 : vector<32x32xf32>
    %95 = math.floor %94 : vector<32x32xf32>
    %cst_46 = arith.constant 0.00392156886 : f32
    %96 = vector.broadcast %cst_46 : f32 to vector<32x32xf32>
    %97 = arith.mulf %95, %96 : vector<32x32xf32>
    %98 = arith.truncf %97 : vector<32x32xf32> to vector<32x32xbf16>
    %c5 = arith.constant 5 : index
    %c0_47 = arith.constant 0 : index
    %c0_48 = arith.constant 0 : index
    %99 = vector.load %arg3[%c5, %c0_47, %c0_48] : memref<6x32x32xbf16, #tpu.memory_space<vmem>>, vector<1x32x32xbf16>
    %100 = vector.shape_cast %99 : vector<1x32x32xbf16> to vector<32x32xbf16>
    %101 = vector.shape_cast %98 : vector<32x32xbf16> to vector<1x32x32xbf16>
    tpu.vector_store %arg3[%c5, %c0_47, %c0_48], %101 {strides = array<i32>} : memref<6x32x32xbf16, #tpu.memory_space<vmem>>, vector<1x32x32xbf16>,
    return
  }
}

</mosaic_0001>

<llo_original>
// kernel: tpu_custom_call.1
$region0: #{tpu_custom_call.1}
  #allocation0 [shape = 'u32[]', space=smem, size = 0x4, offset = 0x4, fixed_abs, tag = 'smem constant byte address 0x4 - core index']
  #allocation1 [shape = 'u32[144,128]{1,0:T(1,128)}', space=vmem, size = 0x12000, scoped, tag = 'internal scratch']
  %s0 = inlined_call_operand.hbm [shape: f32[6,64,64], index: 0, kind: input, shape index: {}]
  %s1 = inlined_call_operand.vmem [shape: f32[64,32], index: 1, kind: input, shape index: {}]
  %s2 = inlined_call_operand.vmem [shape: f32[32,64], index: 2, kind: input, shape index: {}]
  %s3 = inlined_call_operand.hbm [shape: bf16[6,32,32], index: 3, kind: output, shape index: {}]
  %s4 = sld [smem:[#allocation0]]
  $region26: #{tpu_custom_call.1} parent=0
    _
  %s6 = ssub.s32 1, %s4
  %s7 = scalar_select 0, %s6, %s4
  $region1: #{tpu_custom_call.1} parent=0
    #allocation2 [shape = 'u8[196608]{0}', space=vmem, size = 0x30000, scoped, tag = 'input window, operand 0, single buffered']
    #allocation3 [shape = 's32[1]{0}', space=sflag, size = 0x4, scoped, tag = 'scoped memory for tpu_custom_call.1']
    #allocation4 [shape = 's32[1]{0}', space=sflag, size = 0x4, scoped, tag = 'scoped memory for tpu_custom_call.1']
    #allocation5 [shape = 'u8[49152]{0}', space=vmem, size = 0xc000, scoped, tag = 'output window, operand 0, single buffered']
    %8 = vsyncpa [#allocation3], 0
    %9 = vsyncpa [#allocation4], 0
    // Predicated region
    $region2: #{tpu_custom_call.1} parent=1 // pred_check
      _
    $region3: #{tpu_custom_call.1} parent=1 // pred_check_branch
      %11 = sbr.rel (0) target = $region5
    $region4: #{tpu_custom_call.1} parent=1 // pred_region
      %s13 = ssub.s32 6144, 6144
      %14 = vsyncadd [#allocation3], %s13
      %s15 = sshll.u32 [#allocation2], 4
      %s16 = int_to_ptr.vmem [resolvable:$true] %s15
      %21 = dma.hbm_to_vmem [thread:$0]  %s0, 6144, %s16, [#allocation3], 128, 128, 8
    $region5: #{tpu_custom_call.1} parent=1 // pred_fallthru
      _
    // Predicated region
    $region6: #{tpu_custom_call.1} parent=1 // pred_check
      _
    $region7: #{tpu_custom_call.1} parent=1 // pred_check_branch
      %23 = sbr.rel (0) target = $region9
    $region8: #{tpu_custom_call.1} parent=1 // pred_region
      _
    $region9: #{tpu_custom_call.1} parent=1 // pred_fallthru
      _
    // Predicated region
    $region10: #{tpu_custom_call.1} parent=1 // pred_check
      _
    $region11: #{tpu_custom_call.1} parent=1 // pred_check_branch
      %25 = sbr.rel (0) target = $region13
    $region12: #{tpu_custom_call.1} parent=1 // pred_region
      _
    $region13: #{tpu_custom_call.1} parent=1 // pred_fallthru
      _
    // Predicated region
    $region14: #{tpu_custom_call.1} parent=1 // pred_check
      _
    $region15: #{tpu_custom_call.1} parent=1 // pred_check_branch
      %27 = sbr.rel (0) target = $region17
    $region16: #{tpu_custom_call.1} parent=1 // pred_region
      %28 = dma.done [#allocation3], 6144
    $region17: #{tpu_custom_call.1} parent=1 // pred_fallthru
      _
    %v29 = vld [vmem:[#allocation2] sm:$0xff]
    %v30 = vld [vmem:[#allocation2 + $0x8] sm:$0xff]
    %v31 = vld [vmem:[#allocation2 + $0x10] sm:$0xff]
    %v32 = vld [vmem:[#allocation2 + $0x18] sm:$0xff]
    %v33 = vld [vmem:[#allocation2 + $0x20] sm:$0xff]
    %v34 = vld [vmem:[#allocation2 + $0x28] sm:$0xff]
    %v35 = vld [vmem:[#allocation2 + $0x30] sm:$0xff]
    %v36 = vld [vmem:[#allocation2 + $0x38] sm:$0xff]
    %v37 = vld [vmem:[#allocation2 + $0x40] sm:$0xff]
    %v38 = vld [vmem:[#allocation2 + $0x48] sm:$0xff]
    %v39 = vld [vmem:[#allocation2 + $0x50] sm:$0xff]
    %v40 = vld [vmem:[#allocation2 + $0x58] sm:$0xff]
    %v41 = vld [vmem:[#allocation2 + $0x60] sm:$0xff]
    %v42 = vld [vmem:[#allocation2 + $0x68] sm:$0xff]
    %v43 = vld [vmem:[#allocation2 + $0x70] sm:$0xff]
    %v44 = vld [vmem:[#allocation2 + $0x78] sm:$0xff]
    %v45 = vld [vmem:[#allocation2 + $0x80] sm:$0xff]
    %v46 = vld [vmem:[#allocation2 + $0x88] sm:$0xff]
    %v47 = vld [vmem:[#allocation2 + $0x90] sm:$0xff]
    %v48 = vld [vmem:[#allocation2 + $0x98] sm:$0xff]
    %v49 = vld [vmem:[#allocation2 + $0xa0] sm:$0xff]
    %v50 = vld [vmem:[#allocation2 + $0xa8] sm:$0xff]
    %v51 = vld [vmem:[#allocation2 + $0xb0] sm:$0xff]
    %v52 = vld [vmem:[#allocation2 + $0xb8] sm:$0xff]
    %v53 = vld [vmem:[#allocation2 + $0xc0] sm:$0xff]
    %v54 = vld [vmem:[#allocation2 + $0xc8] sm:$0xff]
    %v55 = vld [vmem:[#allocation2 + $0xd0] sm:$0xff]
    %v56 = vld [vmem:[#allocation2 + $0xd8] sm:$0xff]
    %v57 = vld [vmem:[#allocation2 + $0xe0] sm:$0xff]
    %v58 = vld [vmem:[#allocation2 + $0xe8] sm:$0xff]
    %v59 = vld [vmem:[#allocation2 + $0xf0] sm:$0xff]
    %v60 = vld [vmem:[#allocation2 + $0xf8] sm:$0xff]
    %v61 = vld [vmem:[#allocation2 + $0x100] sm:$0xff]
    %v62 = vld [vmem:[#allocation2 + $0x108] sm:$0xff]
    %v63 = vld [vmem:[#allocation2 + $0x110] sm:$0xff]
    %v64 = vld [vmem:[#allocation2 + $0x118] sm:$0xff]
    %v65 = vld [vmem:[#allocation2 + $0x120] sm:$0xff]
    %v66 = vld [vmem:[#allocation2 + $0x128] sm:$0xff]
    %v67 = vld [vmem:[#allocation2 + $0x130] sm:$0xff]
    %v68 = vld [vmem:[#allocation2 + $0x138] sm:$0xff]
    %v69 = vld [vmem:[#allocation2 + $0x140] sm:$0xff]
    %v70 = vld [vmem:[#allocation2 + $0x148] sm:$0xff]
    %v71 = vld [vmem:[#allocation2 + $0x150] sm:$0xff]
    %v72 = vld [vmem:[#allocation2 + $0x158] sm:$0xff]
    %v73 = vld [vmem:[#allocation2 + $0x160] sm:$0xff]
    %v74 = vld [vmem:[#allocation2 + $0x168] sm:$0xff]
    %v75 = vld [vmem:[#allocation2 + $0x170] sm:$0xff]
    %v76 = vld [vmem:[#allocation2 + $0x178] sm:$0xff]
    %v77 = vld [vmem:[%s1] sm:$0xff]
    %v78 = vld [vmem:[%s1 + $0x8] sm:$0xff]
    %v79 = vld [vmem:[%s1 + $0x10] sm:$0xff]
    %v80 = vld [vmem:[%s1 + $0x18] sm:$0xff]
    %v81 = vld [vmem:[%s1 + $0x20] sm:$0xff]
    %v82 = vld [vmem:[%s1 + $0x28] sm:$0xff]
    %v83 = vld [vmem:[%s1 + $0x30] sm:$0xff]
    %v84 = vld [vmem:[%s1 + $0x38] sm:$0xff]
    %vm85 = vcmask 523264
    %v87 = vsel %vm85, %v29, 0
    %v90 = vsel %vm85, %v30, 0
    %v93 = vsel %vm85, %v31, 0
    %v96 = vsel %vm85, %v32, 0
    %v99 = vsel %vm85, %v33, 0
    %v102 = vsel %vm85, %v34, 0
    %v105 = vsel %vm85, %v35, 0
    %v108 = vsel %vm85, %v36, 0
    %v111 = vsel %vm85, %v37, 0
    %v114 = vsel %vm85, %v38, 0
    %v117 = vsel %vm85, %v39, 0
    %v120 = vsel %vm85, %v40, 0
    %v123 = vsel %vm85, %v41, 0
    %v126 = vsel %vm85, %v42, 0
    %v129 = vsel %vm85, %v43, 0
    %v132 = vsel %vm85, %v44, 0
    %v135 = vsel %vm85, %v45, 0
    %v138 = vsel %vm85, %v46, 0
    %v141 = vsel %vm85, %v47, 0
    %v144 = vsel %vm85, %v48, 0
    %v147 = vsel %vm85, %v49, 0
    %v150 = vsel %vm85, %v50, 0
    %v153 = vsel %vm85, %v51, 0
    %v156 = vsel %vm85, %v52, 0
    %v159 = vsel %vm85, %v53, 0
    %v162 = vsel %vm85, %v54, 0
    %v165 = vsel %vm85, %v55, 0
    %v168 = vsel %vm85, %v56, 0
    %v171 = vsel %vm85, %v57, 0
    %v174 = vsel %vm85, %v58, 0
    %v177 = vsel %vm85, %v59, 0
    %v180 = vsel %vm85, %v60, 0
    %v183 = vsel %vm85, %v61, 0
    %v186 = vsel %vm85, %v62, 0
    %v189 = vsel %vm85, %v63, 0
    %v192 = vsel %vm85, %v64, 0
    %v195 = vsel %vm85, %v65, 0
    %v198 = vsel %vm85, %v66, 0
    %v201 = vsel %vm85, %v67, 0
    %v204 = vsel %vm85, %v68, 0
    %v207 = vsel %vm85, %v69, 0
    %v210 = vsel %vm85, %v70, 0
    %v213 = vsel %vm85, %v71, 0
    %v216 = vsel %vm85, %v72, 0
    %v219 = vsel %vm85, %v73, 0
    %v222 = vsel %vm85, %v74, 0
    %v225 = vsel %vm85, %v75, 0
    %v228 = vsel %vm85, %v76, 0
    %230 = vmatprep.subr.mxu0 0.0
    %231 = vmatpush1.msra.mxu0 %v77
    %232 = vmatprep.subr.mxu0 0.0
    %233 = vmatpush1.msra.mxu0 %v78
    %234 = vmatprep.subr.mxu0 0.0
    %235 = vmatpush1.msra.mxu0 %v79
    %236 = vmatprep.subr.mxu0 0.0
    %237 = vmatpush1.msra.mxu0 %v80
    %238 = vmatprep.subr.mxu0 0.0
    %239 = vmatpush1.msra.mxu0 %v81
    %240 = vmatprep.subr.mxu0 0.0
    %241 = vmatpush1.msra.mxu0 %v82
    %242 = vmatprep.subr.mxu0 0.0
    %243 = vmatpush1.msra.mxu0 %v83
    %244 = vmatprep.subr.mxu0 0.0
    %245 = vmatpush1.msra.mxu0 %v84
    %246 = vmatprep.subr.mxu0 0.0
    %247 = vmatpush1.msra.mxu0 0.0
    %248 = vmatprep.subr.mxu0 0.0
    %249 = vmatpush1.msra.mxu0 0.0
    %250 = vmatprep.subr.mxu0 0.0
    %251 = vmatpush1.msra.mxu0 0.0
    %252 = vmatprep.subr.mxu0 0.0
    %253 = vmatpush1.msra.mxu0 0.0
    %254 = vmatprep.subr.mxu0 0.0
    %255 = vmatpush1.msra.mxu0 0.0
    %256 = vmatprep.subr.mxu0 0.0
    %257 = vmatpush1.msra.mxu0 0.0
    %258 = vmatprep.subr.mxu0 0.0
    %259 = vmatpush1.msra.mxu0 0.0
    %260 = vmatprep.subr.mxu0 0.0
    %261 = vmatpush1.msra.mxu0 0.0
    %262 = vmatprep.subr.mxu0 0.0
    %263 = vmatpush1.msra.mxu0 0.0
    %264 = vmatprep.subr.mxu0 0.0
    %265 = vmatpush1.msra.mxu0 0.0
    %266 = vmatprep.subr.mxu0 0.0
    %267 = vmatpush1.msra.mxu0 0.0
    %268 = vmatprep.subr.mxu0 0.0
    %269 = vmatpush1.msra.mxu0 0.0
    %270 = vmatprep.subr.mxu0 0.0
    %271 = vmatpush1.msra.mxu0 0.0
    %272 = vmatprep.subr.mxu0 0.0
    %273 = vmatpush1.msra.mxu0 0.0
    %274 = vmatprep.subr.mxu0 0.0
    %275 = vmatpush1.msra.mxu0 0.0
    %276 = vmatprep.subr.mxu0 0.0
    %277 = vmatpush1.msra.mxu0 0.0
    %278 = vmatprep.subr.mxu0 0.0
    %279 = vmatpush1.msra.mxu0 0.0
    %280 = vmatprep.subr.mxu0 0.0
    %281 = vmatpush1.msra.mxu0 0.0
    %282 = vmatprep.subr.mxu0 0.0
    %283 = vmatpush1.msra.mxu0 0.0
    %284 = vmatprep.subr.mxu0 0.0
    %285 = vmatpush1.msra.mxu0 0.0
    %286 = vmatprep.subr.mxu0 0.0
    %287 = vmatpush1.msra.mxu0 0.0
    %288 = vmatprep.subr.mxu0 0.0
    %289 = vmatpush1.msra.mxu0 0.0
    %290 = vmatprep.subr.mxu0 0.0
    %291 = vmatpush1.msra.mxu0 0.0
    %292 = vmatprep.subr.mxu0 0.0
    %293 = vmatpush1.msra.mxu0 0.0
    %294 = vmatprep.mubr.f32.mxu0 0.0
    %295 = vmatmul.mubr.f32.gmra.mrb[0].mxu0 %v87
    %v296 = vpop.f32.mrb[0].mxu0
    %v297 = vadd.f32 0.0, %v296
    %v298 = vpop.f32.mrb[0].mxu0
    %299 = vmatprep.mubr.f32.mxu0 0.0
    %300 = vmatmul.mubr.f32.gmra.mrb[0].mxu0 %v90
    %v301 = vpop.f32.mrb[0].mxu0
    %v302 = vadd.f32 0.0, %v301
    %v303 = vpop.f32.mrb[0].mxu0
    %304 = vmatprep.mubr.f32.mxu0 0.0
    %305 = vmatmul.mubr.f32.gmra.mrb[0].mxu0 %v93
    %v306 = vpop.f32.mrb[0].mxu0
    %v307 = vadd.f32 0.0, %v306
    %v308 = vpop.f32.mrb[0].mxu0
    %309 = vmatprep.mubr.f32.mxu0 0.0
    %310 = vmatmul.mubr.f32.gmra.mrb[0].mxu0 %v96
    %v311 = vpop.f32.mrb[0].mxu0
    %v312 = vadd.f32 0.0, %v311
    %v313 = vpop.f32.mrb[0].mxu0
    %314 = vmatprep.mubr.f32.mxu0 0.0
    %315 = vmatmul.mubr.f32.gmra.mrb[0].mxu0 %v99
    %v316 = vpop.f32.mrb[0].mxu0
    %v317 = vadd.f32 0.0, %v316
    %v318 = vpop.f32.mrb[0].mxu0
    %319 = vmatprep.mubr.f32.mxu0 0.0
    %320 = vmatmul.mubr.f32.gmra.mrb[0].mxu0 %v102
    %v321 = vpop.f32.mrb[0].mxu0
    %v322 = vadd.f32 0.0, %v321
    %v323 = vpop.f32.mrb[0].mxu0
    %324 = vmatprep.mubr.f32.mxu0 0.0
    %325 = vmatmul.mubr.f32.gmra.mrb[0].mxu0 %v105
    %v326 = vpop.f32.mrb[0].mxu0
    %v327 = vadd.f32 0.0, %v326
    %v328 = vpop.f32.mrb[0].mxu0
    %329 = vmatprep.mubr.f32.mxu0 0.0
    %330 = vmatmul.mubr.f32.gmra.mrb[0].mxu0 %v108
    %v331 = vpop.f32.mrb[0].mxu0
    %v332 = vadd.f32 0.0, %v331
    %v333 = vpop.f32.mrb[0].mxu0
    %334 = vmatprep.mubr.f32.mxu0 0.0
    %335 = vmatmul.mubr.f32.gmra.mrb[0].mxu0 %v111
    %v336 = vpop.f32.mrb[0].mxu0
    %v337 = vadd.f32 0.0, %v336
    %v338 = vpop.f32.mrb[0].mxu0
    %339 = vmatprep.mubr.f32.mxu0 0.0
    %340 = vmatmul.mubr.f32.gmra.mrb[0].mxu0 %v114
    %v341 = vpop.f32.mrb[0].mxu0
    %v342 = vadd.f32 0.0, %v341
    %v343 = vpop.f32.mrb[0].mxu0
    %344 = vmatprep.mubr.f32.mxu0 0.0
    %345 = vmatmul.mubr.f32.gmra.mrb[0].mxu0 %v117
    %v346 = vpop.f32.mrb[0].mxu0
    %v347 = vadd.f32 0.0, %v346
    %v348 = vpop.f32.mrb[0].mxu0
    %349 = vmatprep.mubr.f32.mxu0 0.0
    %350 = vmatmul.mubr.f32.gmra.mrb[0].mxu0 %v120
    %v351 = vpop.f32.mrb[0].mxu0
    %v352 = vadd.f32 0.0, %v351
    %v353 = vpop.f32.mrb[0].mxu0
    %354 = vmatprep.mubr.f32.mxu0 0.0
    %355 = vmatmul.mubr.f32.gmra.mrb[0].mxu0 %v123
    %v356 = vpop.f32.mrb[0].mxu0
    %v357 = vadd.f32 0.0, %v356
    %v358 = vpop.f32.mrb[0].mxu0
    %359 = vmatprep.mubr.f32.mxu0 0.0
    %360 = vmatmul.mubr.f32.gmra.mrb[0].mxu0 %v126
    %v361 = vpop.f32.mrb[0].mxu0
    %v362 = vadd.f32 0.0, %v361
    %v363 = vpop.f32.mrb[0].mxu0
    %364 = vmatprep.mubr.f32.mxu0 0.0
    %365 = vmatmul.mubr.f32.gmra.mrb[0].mxu0 %v129
    %v366 = vpop.f32.mrb[0].mxu0
    %v367 = vadd.f32 0.0, %v366
    %v368 = vpop.f32.mrb[0].mxu0
    %369 = vmatprep.mubr.f32.mxu0 0.0
    %370 = vmatmul.mubr.f32.gmra.mrb[0].mxu0 %v132
    %v371 = vpop.f32.mrb[0].mxu0
    %v372 = vadd.f32 0.0, %v371
    %v373 = vpop.f32.mrb[0].mxu0
    %374 = vmatprep.mubr.f32.mxu0 0.0
    %375 = vmatmul.mubr.f32.gmra.mrb[0].mxu0 %v135
    %v376 = vpop.f32.mrb[0].mxu0
    %v377 = vadd.f32 0.0, %v376
    %v378 = vpop.f32.mrb[0].mxu0
    %379 = vmatprep.mubr.f32.mxu0 0.0
    %380 = vmatmul.mubr.f32.gmra.mrb[0].mxu0 %v138
    %v381 = vpop.f32.mrb[0].mxu0
    %v382 = vadd.f32 0.0, %v381
    %v383 = vpop.f32.mrb[0].mxu0
    %384 = vmatprep.mubr.f32.mxu0 0.0
    %385 = vmatmul.mubr.f32.gmra.mrb[0].mxu0 %v141
    %v386 = vpop.f32.mrb[0].mxu0
    %v387 = vadd.f32 0.0, %v386
    %v388 = vpop.f32.mrb[0].mxu0
    %389 = vmatprep.mubr.f32.mxu0 0.0
    %390 = vmatmul.mubr.f32.gmra.mrb[0].mxu0 %v144
    %v391 = vpop.f32.mrb[0].mxu0
    %v392 = vadd.f32 0.0, %v391
    %v393 = vpop.f32.mrb[0].mxu0
    %394 = vmatprep.mubr.f32.mxu0 0.0
    %395 = vmatmul.mubr.f32.gmra.mrb[0].mxu0 %v147
    %v396 = vpop.f32.mrb[0].mxu0
    %v397 = vadd.f32 0.0, %v396
    %v398 = vpop.f32.mrb[0].mxu0
    %399 = vmatprep.mubr.f32.mxu0 0.0
    %400 = vmatmul.mubr.f32.gmra.mrb[0].mxu0 %v150
    %v401 = vpop.f32.mrb[0].mxu0
    %v402 = vadd.f32 0.0, %v401
    %v403 = vpop.f32.mrb[0].mxu0
    %404 = vmatprep.mubr.f32.mxu0 0.0
    %405 = vmatmul.mubr.f32.gmra.mrb[0].mxu0 %v153
    %v406 = vpop.f32.mrb[0].mxu0
    %v407 = vadd.f32 0.0, %v406
    %v408 = vpop.f32.mrb[0].mxu0
    %409 = vmatprep.mubr.f32.mxu0 0.0
    %410 = vmatmul.mubr.f32.gmra.mrb[0].mxu0 %v156
    %v411 = vpop.f32.mrb[0].mxu0
    %v412 = vadd.f32 0.0, %v411
    %v413 = vpop.f32.mrb[0].mxu0
    %414 = vmatprep.mubr.f32.mxu0 0.0
    %415 = vmatmul.mubr.f32.gmra.mrb[0].mxu0 %v159
    %v416 = vpop.f32.mrb[0].mxu0
    %v417 = vadd.f32 0.0, %v416
    %v418 = vpop.f32.mrb[0].mxu0
    %419 = vmatprep.mubr.f32.mxu0 0.0
    %420 = vmatmul.mubr.f32.gmra.mrb[0].mxu0 %v162
    %v421 = vpop.f32.mrb[0].mxu0
    %v422 = vadd.f32 0.0, %v421
    %v423 = vpop.f32.mrb[0].mxu0
    %424 = vmatprep.mubr.f32.mxu0 0.0
    %425 = vmatmul.mubr.f32.gmra.mrb[0].mxu0 %v165
    %v426 = vpop.f32.mrb[0].mxu0
    %v427 = vadd.f32 0.0, %v426
    %v428 = vpop.f32.mrb[0].mxu0
    %429 = vmatprep.mubr.f32.mxu0 0.0
    %430 = vmatmul.mubr.f32.gmra.mrb[0].mxu0 %v168
    %v431 = vpop.f32.mrb[0].mxu0
    %v432 = vadd.f32 0.0, %v431
    %v433 = vpop.f32.mrb[0].mxu0
    %434 = vmatprep.mubr.f32.mxu0 0.0
    %435 = vmatmul.mubr.f32.gmra.mrb[0].mxu0 %v171
    %v436 = vpop.f32.mrb[0].mxu0
    %v437 = vadd.f32 0.0, %v436
    %v438 = vpop.f32.mrb[0].mxu0
    %439 = vmatprep.mubr.f32.mxu0 0.0
    %440 = vmatmul.mubr.f32.gmra.mrb[0].mxu0 %v174
    %v441 = vpop.f32.mrb[0].mxu0
    %v442 = vadd.f32 0.0, %v441
    %v443 = vpop.f32.mrb[0].mxu0
    %444 = vmatprep.mubr.f32.mxu0 0.0
    %445 = vmatmul.mubr.f32.gmra.mrb[0].mxu0 %v177
    %v446 = vpop.f32.mrb[0].mxu0
    %v447 = vadd.f32 0.0, %v446
    %v448 = vpop.f32.mrb[0].mxu0
    %449 = vmatprep.mubr.f32.mxu0 0.0
    %450 = vmatmul.mubr.f32.gmra.mrb[0].mxu0 %v180
    %v451 = vpop.f32.mrb[0].mxu0
    %v452 = vadd.f32 0.0, %v451
    %v453 = vpop.f32.mrb[0].mxu0
    %454 = vmatprep.mubr.f32.mxu0 0.0
    %455 = vmatmul.mubr.f32.gmra.mrb[0].mxu0 %v183
    %v456 = vpop.f32.mrb[0].mxu0
    %v457 = vadd.f32 0.0, %v456
    %v458 = vpop.f32.mrb[0].mxu0
    %459 = vmatprep.mubr.f32.mxu0 0.0
    %460 = vmatmul.mubr.f32.gmra.mrb[0].mxu0 %v186
    %v461 = vpop.f32.mrb[0].mxu0
    %v462 = vadd.f32 0.0, %v461
    %v463 = vpop.f32.mrb[0].mxu0
    %464 = vmatprep.mubr.f32.mxu0 0.0
    %465 = vmatmul.mubr.f32.gmra.mrb[0].mxu0 %v189
    %v466 = vpop.f32.mrb[0].mxu0
    %v467 = vadd.f32 0.0, %v466
    %v468 = vpop.f32.mrb[0].mxu0
    %469 = vmatprep.mubr.f32.mxu0 0.0
    %470 = vmatmul.mubr.f32.gmra.mrb[0].mxu0 %v192
    %v471 = vpop.f32.mrb[0].mxu0
    %v472 = vadd.f32 0.0, %v471
    %v473 = vpop.f32.mrb[0].mxu0
    %474 = vmatprep.mubr.f32.mxu0 0.0
    %475 = vmatmul.mubr.f32.gmra.mrb[0].mxu0 %v195
    %v476 = vpop.f32.mrb[0].mxu0
    %v477 = vadd.f32 0.0, %v476
    %v478 = vpop.f32.mrb[0].mxu0
    %479 = vmatprep.mubr.f32.mxu0 0.0
    %480 = vmatmul.mubr.f32.gmra.mrb[0].mxu0 %v198
    %v481 = vpop.f32.mrb[0].mxu0
    %v482 = vadd.f32 0.0, %v481
    %v483 = vpop.f32.mrb[0].mxu0
    %484 = vmatprep.mubr.f32.mxu0 0.0
    %485 = vmatmul.mubr.f32.gmra.mrb[0].mxu0 %v201
    %v486 = vpop.f32.mrb[0].mxu0
    %v487 = vadd.f32 0.0, %v486
    %v488 = vpop.f32.mrb[0].mxu0
    %489 = vmatprep.mubr.f32.mxu0 0.0
    %490 = vmatmul.mubr.f32.gmra.mrb[0].mxu0 %v204
    %v491 = vpop.f32.mrb[0].mxu0
    %v492 = vadd.f32 0.0, %v491
    %v493 = vpop.f32.mrb[0].mxu0
    %494 = vmatprep.mubr.f32.mxu0 0.0
    %495 = vmatmul.mubr.f32.gmra.mrb[0].mxu0 %v207
    %v496 = vpop.f32.mrb[0].mxu0
    %v497 = vadd.f32 0.0, %v496
    %v498 = vpop.f32.mrb[0].mxu0
    %499 = vmatprep.mubr.f32.mxu0 0.0
    %500 = vmatmul.mubr.f32.gmra.mrb[0].mxu0 %v210
    %v501 = vpop.f32.mrb[0].mxu0
    %v502 = vadd.f32 0.0, %v501
    %v503 = vpop.f32.mrb[0].mxu0
    %504 = vmatprep.mubr.f32.mxu0 0.0
    %505 = vmatmul.mubr.f32.gmra.mrb[0].mxu0 %v213
    %v506 = vpop.f32.mrb[0].mxu0
    %v507 = vadd.f32 0.0, %v506
    %v508 = vpop.f32.mrb[0].mxu0
    %509 = vmatprep.mubr.f32.mxu0 0.0
    %510 = vmatmul.mubr.f32.gmra.mrb[0].mxu0 %v216
    %v511 = vpop.f32.mrb[0].mxu0
    %v512 = vadd.f32 0.0, %v511
    %v513 = vpop.f32.mrb[0].mxu0
    %514 = vmatprep.mubr.f32.mxu0 0.0
    %515 = vmatmul.mubr.f32.gmra.mrb[0].mxu0 %v219
    %v516 = vpop.f32.mrb[0].mxu0
    %v517 = vadd.f32 0.0, %v516
    %v518 = vpop.f32.mrb[0].mxu0
    %519 = vmatprep.mubr.f32.mxu0 0.0
    %520 = vmatmul.mubr.f32.gmra.mrb[0].mxu0 %v222
    %v521 = vpop.f32.mrb[0].mxu0
    %v522 = vadd.f32 0.0, %v521
    %v523 = vpop.f32.mrb[0].mxu0
    %524 = vmatprep.mubr.f32.mxu0 0.0
    %525 = vmatmul.mubr.f32.gmra.mrb[0].mxu0 %v225
    %v526 = vpop.f32.mrb[0].mxu0
    %v527 = vadd.f32 0.0, %v526
    %v528 = vpop.f32.mrb[0].mxu0
    %529 = vmatprep.mubr.f32.mxu0 0.0
    %530 = vmatmul.mubr.f32.gmra.mrb[0].mxu0 %v228
    %v531 = vpop.f32.mrb[0].mxu0
    %v532 = vadd.f32 0.0, %v531
    %v533 = vpop.f32.mrb[0].mxu0
    %534 = vdwg.mxu0
    %v535 = vld [vmem:[%s2] sm:$0xff]
    %v536 = vld [vmem:[%s2 + $0x8] sm:$0xff]
    %v537 = vld [vmem:[%s2 + $0x10] sm:$0xff]
    %v538 = vld [vmem:[%s2 + $0x18] sm:$0xff]
    %v540 = vsel %vm85, %v535, 0
    %v543 = vsel %vm85, %v536, 0
    %v546 = vsel %vm85, %v537, 0
    %v549 = vsel %vm85, %v538, 0
    %551 = vmatprep.subr.mxu0 0.0
    %552 = vmatpush1.msra.mxu0 %v297
    %553 = vmatprep.subr.mxu0 0.0
    %554 = vmatpush1.msra.mxu0 %v302
    %555 = vmatprep.subr.mxu0 0.0
    %556 = vmatpush1.msra.mxu0 %v307
    %557 = vmatprep.subr.mxu0 0.0
    %558 = vmatpush1.msra.mxu0 %v312
    %559 = vmatprep.subr.mxu0 0.0
    %560 = vmatpush1.msra.mxu0 %v317
    %561 = vmatprep.subr.mxu0 0.0
    %562 = vmatpush1.msra.mxu0 %v322
    %563 = vmatprep.subr.mxu0 0.0
    %564 = vmatpush1.msra.mxu0 %v327
    %565 = vmatprep.subr.mxu0 0.0
    %566 = vmatpush1.msra.mxu0 %v332
    %567 = vmatprep.subr.mxu0 0.0
    %568 = vmatpush1.msra.mxu0 0.0
    %569 = vmatprep.subr.mxu0 0.0
    %570 = vmatpush1.msra.mxu0 0.0
    %571 = vmatprep.subr.mxu0 0.0
    %572 = vmatpush1.msra.mxu0 0.0
    %573 = vmatprep.subr.mxu0 0.0
    %574 = vmatpush1.msra.mxu0 0.0
    %575 = vmatprep.subr.mxu0 0.0
    %576 = vmatpush1.msra.mxu0 0.0
    %577 = vmatprep.subr.mxu0 0.0
    %578 = vmatpush1.msra.mxu0 0.0
    %579 = vmatprep.subr.mxu0 0.0
    %580 = vmatpush1.msra.mxu0 0.0
    %581 = vmatprep.subr.mxu0 0.0
    %582 = vmatpush1.msra.mxu0 0.0
    %583 = vmatprep.subr.mxu0 0.0
    %584 = vmatpush1.msra.mxu0 0.0
    %585 = vmatprep.subr.mxu0 0.0
    %586 = vmatpush1.msra.mxu0 0.0
    %587 = vmatprep.subr.mxu0 0.0
    %588 = vmatpush1.msra.mxu0 0.0
    %589 = vmatprep.subr.mxu0 0.0
    %590 = vmatpush1.msra.mxu0 0.0
    %591 = vmatprep.subr.mxu0 0.0
    %592 = vmatpush1.msra.mxu0 0.0
    %593 = vmatprep.subr.mxu0 0.0
    %594 = vmatpush1.msra.mxu0 0.0
    %595 = vmatprep.subr.mxu0 0.0
    %596 = vmatpush1.msra.mxu0 0.0
    %597 = vmatprep.subr.mxu0 0.0
    %598 = vmatpush1.msra.mxu0 0.0
    %599 = vmatprep.subr.mxu0 0.0
    %600 = vmatpush1.msra.mxu0 0.0
    %601 = vmatprep.subr.mxu0 0.0
    %602 = vmatpush1.msra.mxu0 0.0
    %603 = vmatprep.subr.mxu0 0.0
    %604 = vmatpush1.msra.mxu0 0.0
    %605 = vmatprep.subr.mxu0 0.0
    %606 = vmatpush1.msra.mxu0 0.0
    %607 = vmatprep.subr.mxu0 0.0
    %608 = vmatpush1.msra.mxu0 0.0
    %609 = vmatprep.subr.mxu0 0.0
    %610 = vmatpush1.msra.mxu0 0.0
    %611 = vmatprep.subr.mxu0 0.0
    %612 = vmatpush1.msra.mxu0 0.0
    %613 = vmatprep.subr.mxu0 0.0
    %614 = vmatpush1.msra.mxu0 0.0
    %615 = vmatprep.mubr.f32.mxu0 0.0
    %616 = vmatmul.mubr.f32.gmra.mrb[0].mxu0 %v540
    %v617 = vpop.f32.mrb[0].mxu0
    %v618 = vadd.f32 0.0, %v617
    %v619 = vpop.f32.mrb[0].mxu0
    %620 = vmatprep.mubr.f32.mxu0 0.0
    %621 = vmatmul.mubr.f32.gmra.mrb[0].mxu0 %v543
    %v622 = vpop.f32.mrb[0].mxu0
    %v623 = vadd.f32 0.0, %v622
    %v624 = vpop.f32.mrb[0].mxu0
    %625 = vmatprep.mubr.f32.mxu0 0.0
    %626 = vmatmul.mubr.f32.gmra.mrb[0].mxu0 %v546
    %v627 = vpop.f32.mrb[0].mxu0
    %v628 = vadd.f32 0.0, %v627
    %v629 = vpop.f32.mrb[0].mxu0
    %630 = vmatprep.mubr.f32.mxu0 0.0
    %631 = vmatmul.mubr.f32.gmra.mrb[0].mxu0 %v549
    %v632 = vpop.f32.mrb[0].mxu0
    %v633 = vadd.f32 0.0, %v632
    %v634 = vpop.f32.mrb[0].mxu0
    %635 = vdwg.mxu0
    %v636 = vmax.f32 %v618, 0.0
    %v637 = vmax.f32 %v623, 0.0
    %v638 = vmax.f32 %v628, 0.0
    %v639 = vmax.f32 %v633, 0.0
    %v640 = vmin.f32 %v636, 1.0
    %v641 = vmin.f32 %v637, 1.0
    %v642 = vmin.f32 %v638, 1.0
    %v643 = vmin.f32 %v639, 1.0
    %v644 = vmul.f32 %v640, 255.0
    %v645 = vmul.f32 %v641, 255.0
    %v646 = vmul.f32 %v642, 255.0
    %v647 = vmul.f32 %v643, 255.0
    %v648 = vfloor.f32 %v644
    %v649 = vfloor.f32 %v645
    %v650 = vfloor.f32 %v646
    %v651 = vfloor.f32 %v647
    %v652 = vmul.f32 %v648, 0.003921569
    %v653 = vmul.f32 %v649, 0.003921569
    %v654 = vmul.f32 %v650, 0.003921569
    %v655 = vmul.f32 %v651, 0.003921569
    %v656 = vpack.c.bf16 %v653, %v652
    %v657 = vpack.c.bf16 %v655, %v654
    %v660 = vunpack.c.l.b16 %v656
    %v661 = vunpack.c.h.b16 %v656
    %v662 = vunpack.c.l.b16 %v657
    %v663 = vunpack.c.h.b16 %v657
    %v664 = vpack.c.b16 %v660, %v660
    %v665 = vpack.c.b16 %v661, %v661
    %v666 = vpack.c.b16 %v662, %v662
    %v667 = vpack.c.b16 %v663, %v663
    %vm672 = vcmask 257024
    %673 = vst.msk [vmem:[#allocation5] sm:$0xf] %vm672, %v664
    %674 = vst.msk [vmem:[#allocation5 + $0x4] sm:$0xf] %vm672, %v665
    %675 = vst.msk [vmem:[#allocation5 + $0x8] sm:$0xf] %vm672, %v666
    %676 = vst.msk [vmem:[#allocation5 + $0xc] sm:$0xf] %vm672, %v667
    %677 = vmatprep.subr.mxu0 0.0
    %678 = vmatpush1.msra.mxu0 %v337
    %679 = vmatprep.subr.mxu0 0.0
    %680 = vmatpush1.msra.mxu0 %v342
    %681 = vmatprep.subr.mxu0 0.0
    %682 = vmatpush1.msra.mxu0 %v347
    %683 = vmatprep.subr.mxu0 0.0
    %684 = vmatpush1.msra.mxu0 %v352
    %685 = vmatprep.subr.mxu0 0.0
    %686 = vmatpush1.msra.mxu0 %v357
    %687 = vmatprep.subr.mxu0 0.0
    %688 = vmatpush1.msra.mxu0 %v362
    %689 = vmatprep.subr.mxu0 0.0
    %690 = vmatpush1.msra.mxu0 %v367
    %691 = vmatprep.subr.mxu0 0.0
    %692 = vmatpush1.msra.mxu0 %v372
    %693 = vmatprep.subr.mxu0 0.0
    %694 = vmatpush1.msra.mxu0 0.0
    %695 = vmatprep.subr.mxu0 0.0
    %696 = vmatpush1.msra.mxu0 0.0
    %697 = vmatprep.subr.mxu0 0.0
    %698 = vmatpush1.msra.mxu0 0.0
    %699 = vmatprep.subr.mxu0 0.0
    %700 = vmatpush1.msra.mxu0 0.0
    %701 = vmatprep.subr.mxu0 0.0
    %702 = vmatpush1.msra.mxu0 0.0
    %703 = vmatprep.subr.mxu0 0.0
    %704 = vmatpush1.msra.mxu0 0.0
    %705 = vmatprep.subr.mxu0 0.0
    %706 = vmatpush1.msra.mxu0 0.0
    %707 = vmatprep.subr.mxu0 0.0
    %708 = vmatpush1.msra.mxu0 0.0
    %709 = vmatprep.subr.mxu0 0.0
    %710 = vmatpush1.msra.mxu0 0.0
    %711 = vmatprep.subr.mxu0 0.0
    %712 = vmatpush1.msra.mxu0 0.0
    %713 = vmatprep.subr.mxu0 0.0
    %714 = vmatpush1.msra.mxu0 0.0
    %715 = vmatprep.subr.mxu0 0.0
    %716 = vmatpush1.msra.mxu0 0.0
    %717 = vmatprep.subr.mxu0 0.0
    %718 = vmatpush1.msra.mxu0 0.0
    %719 = vmatprep.subr.mxu0 0.0
    %720 = vmatpush1.msra.mxu0 0.0
    %721 = vmatprep.subr.mxu0 0.0
    %722 = vmatpush1.msra.mxu0 0.0
    %723 = vmatprep.subr.mxu0 0.0
    %724 = vmatpush1.msra.mxu0 0.0
    %725 = vmatprep.subr.mxu0 0.0
    %726 = vmatpush1.msra.mxu0 0.0
    %727 = vmatprep.subr.mxu0 0.0
    %728 = vmatpush1.msra.mxu0 0.0
    %729 = vmatprep.subr.mxu0 0.0
    %730 = vmatpush1.msra.mxu0 0.0
    %731 = vmatprep.subr.mxu0 0.0
    %732 = vmatpush1.msra.mxu0 0.0
    %733 = vmatprep.subr.mxu0 0.0
    %734 = vmatpush1.msra.mxu0 0.0
    %735 = vmatprep.subr.mxu0 0.0
    %736 = vmatpush1.msra.mxu0 0.0
    %737 = vmatprep.subr.mxu0 0.0
    %738 = vmatpush1.msra.mxu0 0.0
    %739 = vmatprep.subr.mxu0 0.0
    %740 = vmatpush1.msra.mxu0 0.0
    %741 = vmatprep.mubr.f32.mxu0 0.0
    %742 = vmatmul.mubr.f32.gmra.mrb[0].mxu0 %v540
    %v743 = vpop.f32.mrb[0].mxu0
    %v744 = vadd.f32 0.0, %v743
    %v745 = vpop.f32.mrb[0].mxu0
    %746 = vmatprep.mubr.f32.mxu0 0.0
    %747 = vmatmul.mubr.f32.gmra.mrb[0].mxu0 %v543
    %v748 = vpop.f32.mrb[0].mxu0
    %v749 = vadd.f32 0.0, %v748
    %v750 = vpop.f32.mrb[0].mxu0
    %751 = vmatprep.mubr.f32.mxu0 0.0
    %752 = vmatmul.mubr.f32.gmra.mrb[0].mxu0 %v546
    %v753 = vpop.f32.mrb[0].mxu0
    %v754 = vadd.f32 0.0, %v753
    %v755 = vpop.f32.mrb[0].mxu0
    %756 = vmatprep.mubr.f32.mxu0 0.0
    %757 = vmatmul.mubr.f32.gmra.mrb[0].mxu0 %v549
    %v758 = vpop.f32.mrb[0].mxu0
    %v759 = vadd.f32 0.0, %v758
    %v760 = vpop.f32.mrb[0].mxu0
    %761 = vdwg.mxu0
    %v762 = vmax.f32 %v744, 0.0
    %v763 = vmax.f32 %v749, 0.0
    %v764 = vmax.f32 %v754, 0.0
    %v765 = vmax.f32 %v759, 0.0
    %v766 = vmin.f32 %v762, 1.0
    %v767 = vmin.f32 %v763, 1.0
    %v768 = vmin.f32 %v764, 1.0
    %v769 = vmin.f32 %v765, 1.0
    %v770 = vmul.f32 %v766, 255.0
    %v771 = vmul.f32 %v767, 255.0
    %v772 = vmul.f32 %v768, 255.0
    %v773 = vmul.f32 %v769, 255.0
    %v774 = vfloor.f32 %v770
    %v775 = vfloor.f32 %v771
    %v776 = vfloor.f32 %v772
    %v777 = vfloor.f32 %v773
    %v778 = vmul.f32 %v774, 0.003921569
    %v779 = vmul.f32 %v775, 0.003921569
    %v780 = vmul.f32 %v776, 0.003921569
    %v781 = vmul.f32 %v777, 0.003921569
    %v782 = vpack.c.bf16 %v779, %v778
    %v783 = vpack.c.bf16 %v781, %v780
    %v786 = vunpack.c.l.b16 %v782
    %v787 = vunpack.c.h.b16 %v782
    %v788 = vunpack.c.l.b16 %v783
    %v789 = vunpack.c.h.b16 %v783
    %v790 = vpack.c.b16 %v786, %v786
    %v791 = vpack.c.b16 %v787, %v787
    %v792 = vpack.c.b16 %v788, %v788
    %v793 = vpack.c.b16 %v789, %v789
    %s798 = scalar_lea.vmem [#allocation5], 16
    %799 = vst.msk [vmem:[%s798] sm:$0xf] %vm672, %v790
    %800 = vst.msk [vmem:[%s798 + $0x4] sm:$0xf] %vm672, %v791
    %801 = vst.msk [vmem:[%s798 + $0x8] sm:$0xf] %vm672, %v792
    %802 = vst.msk [vmem:[%s798 + $0xc] sm:$0xf] %vm672, %v793
    %803 = vmatprep.subr.mxu0 0.0
    %804 = vmatpush1.msra.mxu0 %v377
    %805 = vmatprep.subr.mxu0 0.0
    %806 = vmatpush1.msra.mxu0 %v382
    %807 = vmatprep.subr.mxu0 0.0
    %808 = vmatpush1.msra.mxu0 %v387
    %809 = vmatprep.subr.mxu0 0.0
    %810 = vmatpush1.msra.mxu0 %v392
    %811 = vmatprep.subr.mxu0 0.0
    %812 = vmatpush1.msra.mxu0 %v397
    %813 = vmatprep.subr.mxu0 0.0
    %814 = vmatpush1.msra.mxu0 %v402
    %815 = vmatprep.subr.mxu0 0.0
    %816 = vmatpush1.msra.mxu0 %v407
    %817 = vmatprep.subr.mxu0 0.0
    %818 = vmatpush1.msra.mxu0 %v412
    %819 = vmatprep.subr.mxu0 0.0
    %820 = vmatpush1.msra.mxu0 0.0
    %821 = vmatprep.subr.mxu0 0.0
    %822 = vmatpush1.msra.mxu0 0.0
    %823 = vmatprep.subr.mxu0 0.0
    %824 = vmatpush1.msra.mxu0 0.0
    %825 = vmatprep.subr.mxu0 0.0
    %826 = vmatpush1.msra.mxu0 0.0
    %827 = vmatprep.subr.mxu0 0.0
    %828 = vmatpush1.msra.mxu0 0.0
    %829 = vmatprep.subr.mxu0 0.0
    %830 = vmatpush1.msra.mxu0 0.0
    %831 = vmatprep.subr.mxu0 0.0
    %832 = vmatpush1.msra.mxu0 0.0
    %833 = vmatprep.subr.mxu0 0.0
    %834 = vmatpush1.msra.mxu0 0.0
    %835 = vmatprep.subr.mxu0 0.0
    %836 = vmatpush1.msra.mxu0 0.0
    %837 = vmatprep.subr.mxu0 0.0
    %838 = vmatpush1.msra.mxu0 0.0
    %839 = vmatprep.subr.mxu0 0.0
    %840 = vmatpush1.msra.mxu0 0.0
    %841 = vmatprep.subr.mxu0 0.0
    %842 = vmatpush1.msra.mxu0 0.0
    %843 = vmatprep.subr.mxu0 0.0
    %844 = vmatpush1.msra.mxu0 0.0
    %845 = vmatprep.subr.mxu0 0.0
    %846 = vmatpush1.msra.mxu0 0.0
    %847 = vmatprep.subr.mxu0 0.0
    %848 = vmatpush1.msra.mxu0 0.0
    %849 = vmatprep.subr.mxu0 0.0
    %850 = vmatpush1.msra.mxu0 0.0
    %851 = vmatprep.subr.mxu0 0.0
    %852 = vmatpush1.msra.mxu0 0.0
    %853 = vmatprep.subr.mxu0 0.0
    %854 = vmatpush1.msra.mxu0 0.0
    %855 = vmatprep.subr.mxu0 0.0
    %856 = vmatpush1.msra.mxu0 0.0
    %857 = vmatprep.subr.mxu0 0.0
    %858 = vmatpush1.msra.mxu0 0.0
    %859 = vmatprep.subr.mxu0 0.0
    %860 = vmatpush1.msra.mxu0 0.0
    %861 = vmatprep.subr.mxu0 0.0
    %862 = vmatpush1.msra.mxu0 0.0
    %863 = vmatprep.subr.mxu0 0.0
    %864 = vmatpush1.msra.mxu0 0.0
    %865 = vmatprep.subr.mxu0 0.0
    %866 = vmatpush1.msra.mxu0 0.0
    %867 = vmatprep.mubr.f32.mxu0 0.0
    %868 = vmatmul.mubr.f32.gmra.mrb[0].mxu0 %v540
    %v869 = vpop.f32.mrb[0].mxu0
    %v870 = vadd.f32 0.0, %v869
    %v871 = vpop.f32.mrb[0].mxu0
    %872 = vmatprep.mubr.f32.mxu0 0.0
    %873 = vmatmul.mubr.f32.gmra.mrb[0].mxu0 %v543
    %v874 = vpop.f32.mrb[0].mxu0
    %v875 = vadd.f32 0.0, %v874
    %v876 = vpop.f32.mrb[0].mxu0
    %877 = vmatprep.mubr.f32.mxu0 0.0
    %878 = vmatmul.mubr.f32.gmra.mrb[0].mxu0 %v546
    %v879 = vpop.f32.mrb[0].mxu0
    %v880 = vadd.f32 0.0, %v879
    %v881 = vpop.f32.mrb[0].mxu0
    %882 = vmatprep.mubr.f32.mxu0 0.0
    %883 = vmatmul.mubr.f32.gmra.mrb[0].mxu0 %v549
    %v884 = vpop.f32.mrb[0].mxu0
    %v885 = vadd.f32 0.0, %v884
    %v886 = vpop.f32.mrb[0].mxu0
    %887 = vdwg.mxu0
    %v888 = vmax.f32 %v870, 0.0
    %v889 = vmax.f32 %v875, 0.0
    %v890 = vmax.f32 %v880, 0.0
    %v891 = vmax.f32 %v885, 0.0
    %v892 = vmin.f32 %v888, 1.0
    %v893 = vmin.f32 %v889, 1.0
    %v894 = vmin.f32 %v890, 1.0
    %v895 = vmin.f32 %v891, 1.0
    %v896 = vmul.f32 %v892, 255.0
    %v897 = vmul.f32 %v893, 255.0
    %v898 = vmul.f32 %v894, 255.0
    %v899 = vmul.f32 %v895, 255.0
    %v900 = vfloor.f32 %v896
    %v901 = vfloor.f32 %v897
    %v902 = vfloor.f32 %v898
    %v903 = vfloor.f32 %v899
    %v904 = vmul.f32 %v900, 0.003921569
    %v905 = vmul.f32 %v901, 0.003921569
    %v906 = vmul.f32 %v902, 0.003921569
    %v907 = vmul.f32 %v903, 0.003921569
    %v908 = vpack.c.bf16 %v905, %v904
    %v909 = vpack.c.bf16 %v907, %v906
    %v912 = vunpack.c.l.b16 %v908
    %v913 = vunpack.c.h.b16 %v908
    %v914 = vunpack.c.l.b16 %v909
    %v915 = vunpack.c.h.b16 %v909
    %v916 = vpack.c.b16 %v912, %v912
    %v917 = vpack.c.b16 %v913, %v913
    %v918 = vpack.c.b16 %v914, %v914
    %v919 = vpack.c.b16 %v915, %v915
    %s924 = scalar_lea.vmem [#allocation5], 32
    %925 = vst.msk [vmem:[%s924] sm:$0xf] %vm672, %v916
    %926 = vst.msk [vmem:[%s924 + $0x4] sm:$0xf] %vm672, %v917
    %927 = vst.msk [vmem:[%s924 + $0x8] sm:$0xf] %vm672, %v918
    %928 = vst.msk [vmem:[%s924 + $0xc] sm:$0xf] %vm672, %v919
    %929 = vmatprep.subr.mxu0 0.0
    %930 = vmatpush1.msra.mxu0 %v417
    %931 = vmatprep.subr.mxu0 0.0
    %932 = vmatpush1.msra.mxu0 %v422
    %933 = vmatprep.subr.mxu0 0.0
    %934 = vmatpush1.msra.mxu0 %v427
    %935 = vmatprep.subr.mxu0 0.0
    %936 = vmatpush1.msra.mxu0 %v432
    %937 = vmatprep.subr.mxu0 0.0
    %938 = vmatpush1.msra.mxu0 %v437
    %939 = vmatprep.subr.mxu0 0.0
    %940 = vmatpush1.msra.mxu0 %v442
    %941 = vmatprep.subr.mxu0 0.0
    %942 = vmatpush1.msra.mxu0 %v447
    %943 = vmatprep.subr.mxu0 0.0
    %944 = vmatpush1.msra.mxu0 %v452
    %945 = vmatprep.subr.mxu0 0.0
    %946 = vmatpush1.msra.mxu0 0.0
    %947 = vmatprep.subr.mxu0 0.0
    %948 = vmatpush1.msra.mxu0 0.0
    %949 = vmatprep.subr.mxu0 0.0
    %950 = vmatpush1.msra.mxu0 0.0
    %951 = vmatprep.subr.mxu0 0.0
    %952 = vmatpush1.msra.mxu0 0.0
    %953 = vmatprep.subr.mxu0 0.0
    %954 = vmatpush1.msra.mxu0 0.0
    %955 = vmatprep.subr.mxu0 0.0
    %956 = vmatpush1.msra.mxu0 0.0
    %957 = vmatprep.subr.mxu0 0.0
    %958 = vmatpush1.msra.mxu0 0.0
    %959 = vmatprep.subr.mxu0 0.0
    %960 = vmatpush1.msra.mxu0 0.0
    %961 = vmatprep.subr.mxu0 0.0
    %962 = vmatpush1.msra.mxu0 0.0
    %963 = vmatprep.subr.mxu0 0.0
    %964 = vmatpush1.msra.mxu0 0.0
    %965 = vmatprep.subr.mxu0 0.0
    %966 = vmatpush1.msra.mxu0 0.0
    %967 = vmatprep.subr.mxu0 0.0
    %968 = vmatpush1.msra.mxu0 0.0
    %969 = vmatprep.subr.mxu0 0.0
    %970 = vmatpush1.msra.mxu0 0.0
    %971 = vmatprep.subr.mxu0 0.0
    %972 = vmatpush1.msra.mxu0 0.0
    %973 = vmatprep.subr.mxu0 0.0
    %974 = vmatpush1.msra.mxu0 0.0
    %975 = vmatprep.subr.mxu0 0.0
    %976 = vmatpush1.msra.mxu0 0.0
    %977 = vmatprep.subr.mxu0 0.0
    %978 = vmatpush1.msra.mxu0 0.0
    %979 = vmatprep.subr.mxu0 0.0
    %980 = vmatpush1.msra.mxu0 0.0
    %981 = vmatprep.subr.mxu0 0.0
    %982 = vmatpush1.msra.mxu0 0.0
    %983 = vmatprep.subr.mxu0 0.0
    %984 = vmatpush1.msra.mxu0 0.0
    %985 = vmatprep.subr.mxu0 0.0
    %986 = vmatpush1.msra.mxu0 0.0
    %987 = vmatprep.subr.mxu0 0.0
    %988 = vmatpush1.msra.mxu0 0.0
    %989 = vmatprep.subr.mxu0 0.0
    %990 = vmatpush1.msra.mxu0 0.0
    %991 = vmatprep.subr.mxu0 0.0
    %992 = vmatpush1.msra.mxu0 0.0
    %993 = vmatprep.mubr.f32.mxu0 0.0
    %994 = vmatmul.mubr.f32.gmra.mrb[0].mxu0 %v540
    %v995 = vpop.f32.mrb[0].mxu0
    %v996 = vadd.f32 0.0, %v995
    %v997 = vpop.f32.mrb[0].mxu0
    %998 = vmatprep.mubr.f32.mxu0 0.0
    %999 = vmatmul.mubr.f32.gmra.mrb[0].mxu0 %v543
    %v1000 = vpop.f32.mrb[0].mxu0
    %v1001 = vadd.f32 0.0, %v1000
    %v1002 = vpop.f32.mrb[0].mxu0
    %1003 = vmatprep.mubr.f32.mxu0 0.0
    %1004 = vmatmul.mubr.f32.gmra.mrb[0].mxu0 %v546
    %v1005 = vpop.f32.mrb[0].mxu0
    %v1006 = vadd.f32 0.0, %v1005
    %v1007 = vpop.f32.mrb[0].mxu0
    %1008 = vmatprep.mubr.f32.mxu0 0.0
    %1009 = vmatmul.mubr.f32.gmra.mrb[0].mxu0 %v549
    %v1010 = vpop.f32.mrb[0].mxu0
    %v1011 = vadd.f32 0.0, %v1010
    %v1012 = vpop.f32.mrb[0].mxu0
    %1013 = vdwg.mxu0
    %v1014 = vmax.f32 %v996, 0.0
    %v1015 = vmax.f32 %v1001, 0.0
    %v1016 = vmax.f32 %v1006, 0.0
    %v1017 = vmax.f32 %v1011, 0.0
    %v1018 = vmin.f32 %v1014, 1.0
    %v1019 = vmin.f32 %v1015, 1.0
    %v1020 = vmin.f32 %v1016, 1.0
    %v1021 = vmin.f32 %v1017, 1.0
    %v1022 = vmul.f32 %v1018, 255.0
    %v1023 = vmul.f32 %v1019, 255.0
    %v1024 = vmul.f32 %v1020, 255.0
    %v1025 = vmul.f32 %v1021, 255.0
    %v1026 = vfloor.f32 %v1022
    %v1027 = vfloor.f32 %v1023
    %v1028 = vfloor.f32 %v1024
    %v1029 = vfloor.f32 %v1025
    %v1030 = vmul.f32 %v1026, 0.003921569
    %v1031 = vmul.f32 %v1027, 0.003921569
    %v1032 = vmul.f32 %v1028, 0.003921569
    %v1033 = vmul.f32 %v1029, 0.003921569
    %v1034 = vpack.c.bf16 %v1031, %v1030
    %v1035 = vpack.c.bf16 %v1033, %v1032
    %v1038 = vunpack.c.l.b16 %v1034
    %v1039 = vunpack.c.h.b16 %v1034
    %v1040 = vunpack.c.l.b16 %v1035
    %v1041 = vunpack.c.h.b16 %v1035
    %v1042 = vpack.c.b16 %v1038, %v1038
    %v1043 = vpack.c.b16 %v1039, %v1039
    %v1044 = vpack.c.b16 %v1040, %v1040
    %v1045 = vpack.c.b16 %v1041, %v1041
    %s1050 = scalar_lea.vmem [#allocation5], 48
    %1051 = vst.msk [vmem:[%s1050] sm:$0xf] %vm672, %v1042
    %1052 = vst.msk [vmem:[%s1050 + $0x4] sm:$0xf] %vm672, %v1043
    %1053 = vst.msk [vmem:[%s1050 + $0x8] sm:$0xf] %vm672, %v1044
    %1054 = vst.msk [vmem:[%s1050 + $0xc] sm:$0xf] %vm672, %v1045
    %1055 = vmatprep.subr.mxu0 0.0
    %1056 = vmatpush1.msra.mxu0 %v457
    %1057 = vmatprep.subr.mxu0 0.0
    %1058 = vmatpush1.msra.mxu0 %v462
    %1059 = vmatprep.subr.mxu0 0.0
    %1060 = vmatpush1.msra.mxu0 %v467
    %1061 = vmatprep.subr.mxu0 0.0
    %1062 = vmatpush1.msra.mxu0 %v472
    %1063 = vmatprep.subr.mxu0 0.0
    %1064 = vmatpush1.msra.mxu0 %v477
    %1065 = vmatprep.subr.mxu0 0.0
    %1066 = vmatpush1.msra.mxu0 %v482
    %1067 = vmatprep.subr.mxu0 0.0
    %1068 = vmatpush1.msra.mxu0 %v487
    %1069 = vmatprep.subr.mxu0 0.0
    %1070 = vmatpush1.msra.mxu0 %v492
    %1071 = vmatprep.subr.mxu0 0.0
    %1072 = vmatpush1.msra.mxu0 0.0
    %1073 = vmatprep.subr.mxu0 0.0
    %1074 = vmatpush1.msra.mxu0 0.0
    %1075 = vmatprep.subr.mxu0 0.0
    %1076 = vmatpush1.msra.mxu0 0.0
    %1077 = vmatprep.subr.mxu0 0.0
    %1078 = vmatpush1.msra.mxu0 0.0
    %1079 = vmatprep.subr.mxu0 0.0
    %1080 = vmatpush1.msra.mxu0 0.0
    %1081 = vmatprep.subr.mxu0 0.0
    %1082 = vmatpush1.msra.mxu0 0.0
    %1083 = vmatprep.subr.mxu0 0.0
    %1084 = vmatpush1.msra.mxu0 0.0
    %1085 = vmatprep.subr.mxu0 0.0
    %1086 = vmatpush1.msra.mxu0 0.0
    %1087 = vmatprep.subr.mxu0 0.0
    %1088 = vmatpush1.msra.mxu0 0.0
    %1089 = vmatprep.subr.mxu0 0.0
    %1090 = vmatpush1.msra.mxu0 0.0
    %1091 = vmatprep.subr.mxu0 0.0
    %1092 = vmatpush1.msra.mxu0 0.0
    %1093 = vmatprep.subr.mxu0 0.0
    %1094 = vmatpush1.msra.mxu0 0.0
    %1095 = vmatprep.subr.mxu0 0.0
    %1096 = vmatpush1.msra.mxu0 0.0
    %1097 = vmatprep.subr.mxu0 0.0
    %1098 = vmatpush1.msra.mxu0 0.0
    %1099 = vmatprep.subr.mxu0 0.0
    %1100 = vmatpush1.msra.mxu0 0.0
    %1101 = vmatprep.subr.mxu0 0.0
    %1102 = vmatpush1.msra.mxu0 0.0
    %1103 = vmatprep.subr.mxu0 0.0
    %1104 = vmatpush1.msra.mxu0 0.0
    %1105 = vmatprep.subr.mxu0 0.0
    %1106 = vmatpush1.msra.mxu0 0.0
    %1107 = vmatprep.subr.mxu0 0.0
    %1108 = vmatpush1.msra.mxu0 0.0
    %1109 = vmatprep.subr.mxu0 0.0
    %1110 = vmatpush1.msra.mxu0 0.0
    %1111 = vmatprep.subr.mxu0 0.0
    %1112 = vmatpush1.msra.mxu0 0.0
    %1113 = vmatprep.subr.mxu0 0.0
    %1114 = vmatpush1.msra.mxu0 0.0
    %1115 = vmatprep.subr.mxu0 0.0
    %1116 = vmatpush1.msra.mxu0 0.0
    %1117 = vmatprep.subr.mxu0 0.0
    %1118 = vmatpush1.msra.mxu0 0.0
    %1119 = vmatprep.mubr.f32.mxu0 0.0
    %1120 = vmatmul.mubr.f32.gmra.mrb[0].mxu0 %v540
    %v1121 = vpop.f32.mrb[0].mxu0
    %v1122 = vadd.f32 0.0, %v1121
    %v1123 = vpop.f32.mrb[0].mxu0
    %1124 = vmatprep.mubr.f32.mxu0 0.0
    %1125 = vmatmul.mubr.f32.gmra.mrb[0].mxu0 %v543
    %v1126 = vpop.f32.mrb[0].mxu0
    %v1127 = vadd.f32 0.0, %v1126
    %v1128 = vpop.f32.mrb[0].mxu0
    %1129 = vmatprep.mubr.f32.mxu0 0.0
    %1130 = vmatmul.mubr.f32.gmra.mrb[0].mxu0 %v546
    %v1131 = vpop.f32.mrb[0].mxu0
    %v1132 = vadd.f32 0.0, %v1131
    %v1133 = vpop.f32.mrb[0].mxu0
    %1134 = vmatprep.mubr.f32.mxu0 0.0
    %1135 = vmatmul.mubr.f32.gmra.mrb[0].mxu0 %v549
    %v1136 = vpop.f32.mrb[0].mxu0
    %v1137 = vadd.f32 0.0, %v1136
    %v1138 = vpop.f32.mrb[0].mxu0
    %1139 = vdwg.mxu0
    %v1140 = vmax.f32 %v1122, 0.0
    %v1141 = vmax.f32 %v1127, 0.0
    %v1142 = vmax.f32 %v1132, 0.0
    %v1143 = vmax.f32 %v1137, 0.0
    %v1144 = vmin.f32 %v1140, 1.0
    %v1145 = vmin.f32 %v1141, 1.0
    %v1146 = vmin.f32 %v1142, 1.0
    %v1147 = vmin.f32 %v1143, 1.0
    %v1148 = vmul.f32 %v1144, 255.0
    %v1149 = vmul.f32 %v1145, 255.0
    %v1150 = vmul.f32 %v1146, 255.0
    %v1151 = vmul.f32 %v1147, 255.0
    %v1152 = vfloor.f32 %v1148
    %v1153 = vfloor.f32 %v1149
    %v1154 = vfloor.f32 %v1150
    %v1155 = vfloor.f32 %v1151
    %v1156 = vmul.f32 %v1152, 0.003921569
    %v1157 = vmul.f32 %v1153, 0.003921569
    %v1158 = vmul.f32 %v1154, 0.003921569
    %v1159 = vmul.f32 %v1155, 0.003921569
    %v1160 = vpack.c.bf16 %v1157, %v1156
    %v1161 = vpack.c.bf16 %v1159, %v1158
    %v1164 = vunpack.c.l.b16 %v1160
    %v1165 = vunpack.c.h.b16 %v1160
    %v1166 = vunpack.c.l.b16 %v1161
    %v1167 = vunpack.c.h.b16 %v1161
    %v1168 = vpack.c.b16 %v1164, %v1164
    %v1169 = vpack.c.b16 %v1165, %v1165
    %v1170 = vpack.c.b16 %v1166, %v1166
    %v1171 = vpack.c.b16 %v1167, %v1167
    %s1176 = scalar_lea.vmem [#allocation5], 64
    %1177 = vst.msk [vmem:[%s1176] sm:$0xf] %vm672, %v1168
    %1178 = vst.msk [vmem:[%s1176 + $0x4] sm:$0xf] %vm672, %v1169
    %1179 = vst.msk [vmem:[%s1176 + $0x8] sm:$0xf] %vm672, %v1170
    %1180 = vst.msk [vmem:[%s1176 + $0xc] sm:$0xf] %vm672, %v1171
    %1181 = vmatprep.subr.mxu0 0.0
    %1182 = vmatpush1.msra.mxu0 %v497
    %1183 = vmatprep.subr.mxu0 0.0
    %1184 = vmatpush1.msra.mxu0 %v502
    %1185 = vmatprep.subr.mxu0 0.0
    %1186 = vmatpush1.msra.mxu0 %v507
    %1187 = vmatprep.subr.mxu0 0.0
    %1188 = vmatpush1.msra.mxu0 %v512
    %1189 = vmatprep.subr.mxu0 0.0
    %1190 = vmatpush1.msra.mxu0 %v517
    %1191 = vmatprep.subr.mxu0 0.0
    %1192 = vmatpush1.msra.mxu0 %v522
    %1193 = vmatprep.subr.mxu0 0.0
    %1194 = vmatpush1.msra.mxu0 %v527
    %1195 = vmatprep.subr.mxu0 0.0
    %1196 = vmatpush1.msra.mxu0 %v532
    %1197 = vmatprep.subr.mxu0 0.0
    %1198 = vmatpush1.msra.mxu0 0.0
    %1199 = vmatprep.subr.mxu0 0.0
    %1200 = vmatpush1.msra.mxu0 0.0
    %1201 = vmatprep.subr.mxu0 0.0
    %1202 = vmatpush1.msra.mxu0 0.0
    %1203 = vmatprep.subr.mxu0 0.0
    %1204 = vmatpush1.msra.mxu0 0.0
    %1205 = vmatprep.subr.mxu0 0.0
    %1206 = vmatpush1.msra.mxu0 0.0
    %1207 = vmatprep.subr.mxu0 0.0
    %1208 = vmatpush1.msra.mxu0 0.0
    %1209 = vmatprep.subr.mxu0 0.0
    %1210 = vmatpush1.msra.mxu0 0.0
    %1211 = vmatprep.subr.mxu0 0.0
    %1212 = vmatpush1.msra.mxu0 0.0
    %1213 = vmatprep.subr.mxu0 0.0
    %1214 = vmatpush1.msra.mxu0 0.0
    %1215 = vmatprep.subr.mxu0 0.0
    %1216 = vmatpush1.msra.mxu0 0.0
    %1217 = vmatprep.subr.mxu0 0.0
    %1218 = vmatpush1.msra.mxu0 0.0
    %1219 = vmatprep.subr.mxu0 0.0
    %1220 = vmatpush1.msra.mxu0 0.0
    %1221 = vmatprep.subr.mxu0 0.0
    %1222 = vmatpush1.msra.mxu0 0.0
    %1223 = vmatprep.subr.mxu0 0.0
    %1224 = vmatpush1.msra.mxu0 0.0
    %1225 = vmatprep.subr.mxu0 0.0
    %1226 = vmatpush1.msra.mxu0 0.0
    %1227 = vmatprep.subr.mxu0 0.0
    %1228 = vmatpush1.msra.mxu0 0.0
    %1229 = vmatprep.subr.mxu0 0.0
    %1230 = vmatpush1.msra.mxu0 0.0
    %1231 = vmatprep.subr.mxu0 0.0
    %1232 = vmatpush1.msra.mxu0 0.0
    %1233 = vmatprep.subr.mxu0 0.0
    %1234 = vmatpush1.msra.mxu0 0.0
    %1235 = vmatprep.subr.mxu0 0.0
    %1236 = vmatpush1.msra.mxu0 0.0
    %1237 = vmatprep.subr.mxu0 0.0
    %1238 = vmatpush1.msra.mxu0 0.0
    %1239 = vmatprep.subr.mxu0 0.0
    %1240 = vmatpush1.msra.mxu0 0.0
    %1241 = vmatprep.subr.mxu0 0.0
    %1242 = vmatpush1.msra.mxu0 0.0
    %1243 = vmatprep.subr.mxu0 0.0
    %1244 = vmatpush1.msra.mxu0 0.0
    %1245 = vmatprep.mubr.f32.mxu0 0.0
    %1246 = vmatmul.mubr.f32.gmra.mrb[0].mxu0 %v540
    %v1247 = vpop.f32.mrb[0].mxu0
    %v1248 = vadd.f32 0.0, %v1247
    %v1249 = vpop.f32.mrb[0].mxu0
    %1250 = vmatprep.mubr.f32.mxu0 0.0
    %1251 = vmatmul.mubr.f32.gmra.mrb[0].mxu0 %v543
    %v1252 = vpop.f32.mrb[0].mxu0
    %v1253 = vadd.f32 0.0, %v1252
    %v1254 = vpop.f32.mrb[0].mxu0
    %1255 = vmatprep.mubr.f32.mxu0 0.0
    %1256 = vmatmul.mubr.f32.gmra.mrb[0].mxu0 %v546
    %v1257 = vpop.f32.mrb[0].mxu0
    %v1258 = vadd.f32 0.0, %v1257
    %v1259 = vpop.f32.mrb[0].mxu0
    %1260 = vmatprep.mubr.f32.mxu0 0.0
    %1261 = vmatmul.mubr.f32.gmra.mrb[0].mxu0 %v549
    %v1262 = vpop.f32.mrb[0].mxu0
    %v1263 = vadd.f32 0.0, %v1262
    %v1264 = vpop.f32.mrb[0].mxu0
    %1265 = vdwg.mxu0
    %v1266 = vmax.f32 %v1248, 0.0
    %v1267 = vmax.f32 %v1253, 0.0
    %v1268 = vmax.f32 %v1258, 0.0
    %v1269 = vmax.f32 %v1263, 0.0
    %v1270 = vmin.f32 %v1266, 1.0
    %v1271 = vmin.f32 %v1267, 1.0
    %v1272 = vmin.f32 %v1268, 1.0
    %v1273 = vmin.f32 %v1269, 1.0
    %v1274 = vmul.f32 %v1270, 255.0
    %v1275 = vmul.f32 %v1271, 255.0
    %v1276 = vmul.f32 %v1272, 255.0
    %v1277 = vmul.f32 %v1273, 255.0
    %v1278 = vfloor.f32 %v1274
    %v1279 = vfloor.f32 %v1275
    %v1280 = vfloor.f32 %v1276
    %v1281 = vfloor.f32 %v1277
    %v1282 = vmul.f32 %v1278, 0.003921569
    %v1283 = vmul.f32 %v1279, 0.003921569
    %v1284 = vmul.f32 %v1280, 0.003921569
    %v1285 = vmul.f32 %v1281, 0.003921569
    %v1286 = vpack.c.bf16 %v1283, %v1282
    %v1287 = vpack.c.bf16 %v1285, %v1284
    %v1290 = vunpack.c.l.b16 %v1286
    %v1291 = vunpack.c.h.b16 %v1286
    %v1292 = vunpack.c.l.b16 %v1287
    %v1293 = vunpack.c.h.b16 %v1287
    %v1294 = vpack.c.b16 %v1290, %v1290
    %v1295 = vpack.c.b16 %v1291, %v1291
    %v1296 = vpack.c.b16 %v1292, %v1292
    %v1297 = vpack.c.b16 %v1293, %v1293
    %s1302 = scalar_lea.vmem [#allocation5], 80
    %1303 = vst.msk [vmem:[%s1302] sm:$0xf] %vm672, %v1294
    %1304 = vst.msk [vmem:[%s1302 + $0x4] sm:$0xf] %vm672, %v1295
    %1305 = vst.msk [vmem:[%s1302 + $0x8] sm:$0xf] %vm672, %v1296
    %1306 = vst.msk [vmem:[%s1302 + $0xc] sm:$0xf] %vm672, %v1297
    // Predicated region
    $region18: #{tpu_custom_call.1} parent=1 // pred_check
      _
    $region19: #{tpu_custom_call.1} parent=1 // pred_check_branch
      %1308 = sbr.rel (0) target = $region21
    $region20: #{tpu_custom_call.1} parent=1 // pred_region
      %s1310 = ssub.s32 1536, 1536
      %1311 = vsyncadd [#allocation4], %s1310
      %s1312 = sshll.u32 [#allocation5], 4
      %s1313 = int_to_ptr.vmem [resolvable:$true] %s1312
      %1318 = dma.vmem_to_hbm [thread:$0]  %s1313, 1536, %s3, [#allocation4], 64, 64, 4
    $region21: #{tpu_custom_call.1} parent=1 // pred_fallthru
      _
    // Predicated region
    $region22: #{tpu_custom_call.1} parent=1 // pred_check
      _
    $region23: #{tpu_custom_call.1} parent=1 // pred_check_branch
      %1320 = sbr.rel (0) target = $region25
    $region24: #{tpu_custom_call.1} parent=1 // pred_region
      %1321 = dma.done [#allocation4], 1536
    $region25: #{tpu_custom_call.1} parent=1 // pred_fallthru
      _
    %1322 = vsyncpa [#allocation3], 1
    %1323 = vsyncpa [#allocation4], 1

</llo_original>
